<compile_context>
chip_gen: v7x
topology: tpu7x:2x2x1
jax: 0.10.0
libtpu: 0.0.40
codegen_flags: <defaults>
</compile_context>

<pallas_src>
from typing import Dict, List

import jax
import jax.numpy as jnp
from jax.experimental import pallas as pl
from jax.experimental.pallas import tpu as pltpu

BN_EPS = 1e-5


def num_split(num: int, divider: int) -> List[int]:
    nums = [num // divider] * divider
    for index in range(num % divider):
        nums[index] += 1
    return nums


def round_up(x: int, m: int) -> int:
    return ((x + m - 1) // m) * m


def build_plan(dim_out: int, num_encoders: int, num_branches: int = 3):
    """[encoder] -> list over branches of (num_strips, [dim_part per strip])."""
    plan = []
    for dim_enc in num_split(dim_out, num_encoders):
        branches = []
        for num_strips, dim_branch in enumerate(num_split(dim_enc, num_branches), 1):
            branches.append((num_strips, num_split(dim_branch, num_strips)))
        plan.append(branches)
    return plan


# ---------------------------------------------------------------------------
# Parameter construction (mirrors module __init__ structure) + BN folding
# ---------------------------------------------------------------------------
def init_strip_projector_params(key, in_channels: int, dim_part: int):
    kw, km, kv = jax.random.split(key, 3)
    # Xavier-uniform Linear(in_channels, dim_part, bias=False), stored as (C, D)
    limit = (6.0 / (in_channels + dim_part)) ** 0.5
    w = jax.random.uniform(kw, (in_channels, dim_part), jnp.float32, -limit, limit)
    # BatchNorm1d affine params + (non-trivial, deterministic) running statistics
    gamma = jnp.ones((dim_part,), jnp.float32)
    beta = jnp.zeros((dim_part,), jnp.float32)
    mean = 0.1 * jax.random.normal(km, (dim_part,), jnp.float32)
    var = jnp.abs(jax.random.normal(kv, (dim_part,), jnp.float32)) + 0.5
    return (w, gamma, beta, mean, var)


def build_raw_params(key, in_channels_list, dim_out, num_branches=3):
    """Nested list: params[encoder][branch][strip] -> (w, gamma, beta, mean, var)."""
    plan = build_plan(dim_out, len(in_channels_list), num_branches)
    params = []
    for channels, branches in zip(in_channels_list, plan):
        enc = []
        for _num_strips, dims in branches:
            strips = []
            for dim_part in dims:
                key, sub = jax.random.split(key)
                strips.append(init_strip_projector_params(sub, channels, dim_part))
            enc.append(strips)
        params.append(enc)
    return params, plan


def fold_params(raw_params, plan, in_channels_list, weight_dtype=jnp.bfloat16):
    """Fold eval-mode BatchNorm into the Linear and pack per-encoder block-diagonal weights.

    Per encoder e (S_e strips, C_e channels, dim_enc_e output columns):
      w_e : (S_e*C_e, dpad_e)  bf16 block-diagonal folded weight
            rows [s*C : (s+1)*C] hold strip s's folded weight in its local column range,
            zeros elsewhere; dpad_e = round_up(dim_enc_e, 128) lane padding.
      b_e : (1, dpad_e)        f32 folded bias (zeros in padded columns).
    Column order within an encoder matches the torch cat order (branch-major, strip-major).
    """
    w_list, b_list, enc_meta = [], [], []
    off = 0
    for enc_params, branches, c in zip(raw_params, plan, in_channels_list):
        dims = [d for (_ns, ds) in branches for d in ds]
        dim_enc = sum(dims)
        s_total = len(dims)
        dpad = round_up(dim_enc, 128)
        w_blk = jnp.zeros((s_total * c, dpad), jnp.float32)
        b_blk = jnp.zeros((1, dpad), jnp.float32)
        col = 0
        s_idx = 0
        for branch in enc_params:
            for (w, gamma, beta, mean, var) in branch:
                d = w.shape[1]
                scale = gamma * jax.lax.rsqrt(var + BN_EPS)
                w_blk = w_blk.at[s_idx * c:(s_idx + 1) * c, col:col + d].set(w * scale[None, :])
                b_blk = b_blk.at[0, col:col + d].set(beta - mean * scale)
                col += d
                s_idx += 1
        assert col == dim_enc
        w_list.append(w_blk.astype(weight_dtype))
        b_list.append(b_blk)
        enc_meta.append(dict(C=c, SC=s_total * c, dim_enc=dim_enc, dpad=dpad, off=off))
        off += dpad
    return w_list, b_list, enc_meta


# ---------------------------------------------------------------------------
# Fused Pallas kernel: the whole Embedder, one launch, grid over batch tiles
#   refs: [feat_0, w_0, b_0, feat_1, w_1, b_1, ...], out, stack_scratch
#     feat_e : (TN, H_e, W_e, C_e)   channel-last feature tile
#     w_e    : (S_e*C_e, dpad_e)     BN-folded block-diagonal weight (bf16)
#     b_e    : (1, dpad_e)           BN-folded bias (f32)
#     out    : (TN, sum_e dpad_e)
#     stack  : (TN, max_e S_e*C_e)   VMEM scratch for the stacked pooled activations
# ---------------------------------------------------------------------------
def _make_embedder_kernel(meta):
    num_encoders = len(meta)

    def kernel(*refs):
        *in_refs, out_ref, stack_ref = refs
        for e in range(num_encoders):
            enc = meta[e]
            feat_ref, w_ref, b_ref = in_refs[3 * e], in_refs[3 * e + 1], in_refs[3 * e + 2]
            feat = feat_ref[...]                                   # (TN, H, W, C)
            c = enc["C"]
            branch_slices = enc["branch_slices"]

            # --- pooling: VPU max over H (leading axis), then one sublane reduce over W.
            pools = {}                                              # (branch, strip) -> (TN, C)
            for b_idx, slices in enumerate(branch_slices):
                if len(slices) == 1 and len(branch_slices) > 1:
                    continue                                        # derive full-H pool below
                for s_idx, (h0, hs) in enumerate(slices):
                    x = feat[:, h0:h0 + hs]                         # (TN, hs, W, C)
                    pools[(b_idx, s_idx)] = jnp.max(jnp.max(x, axis=1), axis=1)
            # Full-H (single-strip) branch = elementwise max of another branch's strip
            # pools (those strips tile H exactly) — no extra spatial reduction needed.
            for b_idx, slices in enumerate(branch_slices):
                if len(slices) != 1 or (b_idx, 0) in pools:
                    continue
                donor = min(
                    (bi for bi in range(len(branch_slices))
                     if bi != b_idx and (bi, 0) in pools),
                    key=lambda bi: len(branch_slices[bi]))
                acc = pools[(donor, 0)]
                for si in range(1, len(branch_slices[donor])):
                    acc = jnp.maximum(acc, pools[(donor, si)])
                pools[(b_idx, 0)] = acc

            # --- stack pooled vectors along the contraction axis (branch-major order),
            #     matching the block-diagonal weight's row grouping.
            k0 = 0
            for b_idx, slices in enumerate(branch_slices):
                for s_idx in range(len(slices)):
                    stack_ref[:, k0:k0 + c] = pools[(b_idx, s_idx)]
                    k0 += c
            sc = enc["SC"]
            stacked = stack_ref[:, :sc].astype(w_ref.dtype)         # (TN, S*C) bf16

            # --- one long-K MXU dot per encoder, f32 accumulation, folded bias added,
            #     single lane-aligned store into this encoder's padded column block.
            y = jnp.dot(stacked, w_ref[...], preferred_element_type=jnp.float32)
            off, dpad = enc["off"], enc["dpad"]
            out_ref[:, off:off + dpad] = (y + b_ref[...]).astype(out_ref.dtype)

    return kernel


def embedder_forward(feat_maps: Dict[str, jnp.ndarray], in_feat_names, w_list, b_list,
                     enc_meta, plan):
    n = feat_maps[in_feat_names[0]].shape[0]
    tn = 8 if n % 8 == 0 else n                                     # batch tile

    args, in_specs, meta = [], [], []
    for e, feat_nm in enumerate(in_feat_names):
        fm = feat_maps[feat_nm]                                     # NCHW (PyTorch layout)
        h, w = fm.shape[2], fm.shape[3]
        fm = jnp.transpose(fm, (0, 2, 3, 1))                        # -> NHWC: C on lanes
        c = fm.shape[3]

        branch_slices = []
        for num_strips, _dims in plan[e]:
            sl, h0 = [], 0
            for hs in num_split(h, num_strips):                     # split along H
                sl.append((h0, hs))
                h0 += hs
            branch_slices.append(tuple(sl))
        m = dict(enc_meta[e])
        m["branch_slices"] = tuple(branch_slices)
        meta.append(m)

        args += [fm, w_list[e], b_list[e]]
        in_specs += [
            pl.BlockSpec((tn, h, w, c), lambda i: (i, 0, 0, 0)),    # pipelined per batch tile
            pl.BlockSpec(w_list[e].shape, lambda i: (0, 0)),        # grid-resident
            pl.BlockSpec(b_list[e].shape, lambda i: (0, 0)),        # grid-resident
        ]

    d_pad_total = sum(m["dpad"] for m in meta)
    max_sc = max(m["SC"] for m in meta)

    out_pad = pl.pallas_call(
        _make_embedder_kernel(tuple(meta)),
        out_shape=jax.ShapeDtypeStruct((n, d_pad_total), jnp.float32),
        grid=(n // tn,),
        in_specs=in_specs,
        out_specs=pl.BlockSpec((tn, d_pad_total), lambda i: (i, 0)),
        scratch_shapes=[pltpu.VMEM((tn, max_sc), jnp.float32)],
        compiler_params=pltpu.CompilerParams(
            dimension_semantics=("parallel",),
            vmem_limit_bytes=48 * 1024 * 1024,
        ),
    )(*args)

    # Strip per-encoder lane padding (a plain contiguous slice when dim_enc % 128 == 0).
    pieces = [out_pad[:, m["off"]:m["off"] + m["dim_enc"]] for m in meta]
    return jnp.concatenate(pieces, axis=1)


# ---------------------------------------------------------------------------
# Pure-JAX reference (unfused, explicit BN, f32) for correctness validation
# ---------------------------------------------------------------------------
def reference_forward(feat_maps, in_feat_names, raw_params):
    enc_outs = []
    for e, feat_nm in enumerate(in_feat_names):
        fm = feat_maps[feat_nm]
        h = fm.shape[2]
        branch_outs = []
        for branch in raw_params[e]:
            heights = num_split(h, len(branch))
            strip_outs = []
            h0 = 0
            for (w, gamma, beta, mean, var), hs in zip(branch, heights):
                strip = fm[:, :, h0:h0 + hs, :]
                h0 += hs
                pooled = jnp.max(strip, axis=(2, 3))
                y = pooled @ w
                y = (y - mean) * jax.lax.rsqrt(var + BN_EPS) * gamma + beta
                strip_outs.append(y)
            branch_outs.append(jnp.concatenate(strip_outs, axis=1))
        enc_outs.append(jnp.concatenate(branch_outs, axis=1))
    return jnp.concatenate(enc_outs, axis=1)


if __name__ == "__main__":
    key = jax.random.PRNGKey(0)
    in_feat_names = ["feat_a", "feat_b"]
    in_channels_list = [4, 8]
    dim_out = 48
    n, h, w = 16, 12, 16                                            # n=16 -> 2 batch tiles of 8

    k_a, k_b, k_p = jax.random.split(key, 3)
    feat_maps = {
        "feat_a": jax.random.normal(k_a, (n, in_channels_list[0], h, w), jnp.float32),
        "feat_b": jax.random.normal(k_b, (n, in_channels_list[1], h, w), jnp.float32),
    }

    raw_params, plan = build_raw_params(k_p, in_channels_list, dim_out, num_branches=3)
    w_list, b_list, enc_meta = fold_params(raw_params, plan, in_channels_list,
                                           weight_dtype=jnp.bfloat16)

    out = embedder_forward(feat_maps, in_feat_names, w_list, b_list, enc_meta, plan)
    out = jax.block_until_ready(out)
    assert out.shape == (n, dim_out), out.shape
    assert bool(jnp.all(jnp.isfinite(out)))

    ref = reference_forward(feat_maps, in_feat_names, raw_params)
    # Kernel feeds bf16 weights/activations to the MXU with f32 accumulation; the gap vs the
    # pure-f32 reference is bf16 input quantization only, hence the loosened tolerance.
    err = float(jnp.max(jnp.abs(out - ref)))
    assert jnp.allclose(out, ref, rtol=5e-2, atol=5e-2), err
    print("KERNEL_OK")
</pallas_src>

<mosaic_0001>
module attributes {stable_mosaic.version = 11 : i64} {
  func.func @kernel(%arg0: i32, %arg1: memref<8x12x16x4xf32, #tpu.memory_space<vmem>>, %arg2: memref<24x128xbf16, #tpu.memory_space<vmem>>, %arg3: memref<1x128xf32, #tpu.memory_space<vmem>>, %arg4: memref<8x12x16x8xf32, #tpu.memory_space<vmem>>, %arg5: memref<48x128xbf16, #tpu.memory_space<vmem>>, %arg6: memref<1x128xf32, #tpu.memory_space<vmem>>, %arg7: memref<8x256xf32, #tpu.memory_space<vmem>>, %arg8: memref<8x48xf32, #tpu.memory_space<vmem>>) attributes {dimension_semantics = [#tpu.dimension_semantics<parallel>], iteration_bounds = array<i64: 2>, scalar_prefetch = 0 : i64, scratch_operands = 1 : i64, tpu.core_type = #tpu.core_type<tc>, window_params = [{transform_indices = @transform_0, window_bounds = array<i64: 8, 12, 16, 4>}, {pipeline_mode = #tpu.pipeline_mode<synchronous>, transform_indices = @transform_1, window_bounds = array<i64: 24, 128>}, {pipeline_mode = #tpu.pipeline_mode<synchronous>, transform_indices = @transform_2, window_bounds = array<i64: 1, 128>}, {transform_indices = @transform_3, window_bounds = array<i64: 8, 12, 16, 8>}, {pipeline_mode = #tpu.pipeline_mode<synchronous>, transform_indices = @transform_4, window_bounds = array<i64: 48, 128>}, {pipeline_mode = #tpu.pipeline_mode<synchronous>, transform_indices = @transform_5, window_bounds = array<i64: 1, 128>}, {transform_indices = @transform_6, window_bounds = array<i64: 8, 256>}]} {
    %c0 = arith.constant 0 : index
    %c0_0 = arith.constant 0 : index
    %c0_1 = arith.constant 0 : index
    %c0_2 = arith.constant 0 : index
    %0 = vector.load %arg1[%c0, %c0_0, %c0_1, %c0_2] : memref<8x12x16x4xf32, #tpu.memory_space<vmem>>, vector<8x12x16x4xf32>
    %1 = vector.extract_strided_slice %0 {offsets = [0, 0, 0, 0], sizes = [8, 6, 16, 4], strides = [1, 1, 1, 1]} : vector<8x12x16x4xf32> to vector<8x6x16x4xf32>
    %cst = arith.constant dense<0xFF800000> : vector<8x16x4xf32>
    %2 = vector.multi_reduction <maximumf>, %1, %cst [1] : vector<8x6x16x4xf32> to vector<8x16x4xf32>
    %cst_3 = arith.constant dense<0xFF800000> : vector<8x4xf32>
    %3 = vector.multi_reduction <maximumf>, %2, %cst_3 [1] : vector<8x16x4xf32> to vector<8x4xf32>
    %4 = vector.extract_strided_slice %0 {offsets = [0, 6, 0, 0], sizes = [8, 6, 16, 4], strides = [1, 1, 1, 1]} : vector<8x12x16x4xf32> to vector<8x6x16x4xf32>
    %cst_4 = arith.constant dense<0xFF800000> : vector<8x16x4xf32>
    %5 = vector.multi_reduction <maximumf>, %4, %cst_4 [1] : vector<8x6x16x4xf32> to vector<8x16x4xf32>
    %cst_5 = arith.constant dense<0xFF800000> : vector<8x4xf32>
    %6 = vector.multi_reduction <maximumf>, %5, %cst_5 [1] : vector<8x16x4xf32> to vector<8x4xf32>
    %7 = vector.extract_strided_slice %0 {offsets = [0, 0, 0, 0], sizes = [8, 4, 16, 4], strides = [1, 1, 1, 1]} : vector<8x12x16x4xf32> to vector<8x4x16x4xf32>
    %cst_6 = arith.constant dense<0xFF800000> : vector<8x16x4xf32>
    %8 = vector.multi_reduction <maximumf>, %7, %cst_6 [1] : vector<8x4x16x4xf32> to vector<8x16x4xf32>
    %cst_7 = arith.constant dense<0xFF800000> : vector<8x4xf32>
    %9 = vector.multi_reduction <maximumf>, %8, %cst_7 [1] : vector<8x16x4xf32> to vector<8x4xf32>
    %10 = vector.extract_strided_slice %0 {offsets = [0, 4, 0, 0], sizes = [8, 4, 16, 4], strides = [1, 1, 1, 1]} : vector<8x12x16x4xf32> to vector<8x4x16x4xf32>
    %cst_8 = arith.constant dense<0xFF800000> : vector<8x16x4xf32>
    %11 = vector.multi_reduction <maximumf>, %10, %cst_8 [1] : vector<8x4x16x4xf32> to vector<8x16x4xf32>
    %cst_9 = arith.constant dense<0xFF800000> : vector<8x4xf32>
    %12 = vector.multi_reduction <maximumf>, %11, %cst_9 [1] : vector<8x16x4xf32> to vector<8x4xf32>
    %13 = vector.extract_strided_slice %0 {offsets = [0, 8, 0, 0], sizes = [8, 4, 16, 4], strides = [1, 1, 1, 1]} : vector<8x12x16x4xf32> to vector<8x4x16x4xf32>
    %cst_10 = arith.constant dense<0xFF800000> : vector<8x16x4xf32>
    %14 = vector.multi_reduction <maximumf>, %13, %cst_10 [1] : vector<8x4x16x4xf32> to vector<8x16x4xf32>
    %cst_11 = arith.constant dense<0xFF800000> : vector<8x4xf32>
    %15 = vector.multi_reduction <maximumf>, %14, %cst_11 [1] : vector<8x16x4xf32> to vector<8x4xf32>
    %16 = arith.maximumf %3, %6 : vector<8x4xf32>
    %c0_12 = arith.constant 0 : index
    %c0_13 = arith.constant 0 : index
    %17 = vector.load %arg8[%c0_12, %c0_13] : memref<8x48xf32, #tpu.memory_space<vmem>>, vector<8x4xf32>
    tpu.vector_store %arg8[%c0_12, %c0_13], %16 {strides = array<i32>} : memref<8x48xf32, #tpu.memory_space<vmem>>, vector<8x4xf32>,
    %c0_14 = arith.constant 0 : index
    %c4 = arith.constant 4 : index
    %18 = vector.load %arg8[%c0_14, %c4] : memref<8x48xf32, #tpu.memory_space<vmem>>, vector<8x4xf32>
    tpu.vector_store %arg8[%c0_14, %c4], %3 {strides = array<i32>} : memref<8x48xf32, #tpu.memory_space<vmem>>, vector<8x4xf32>,
    %c0_15 = arith.constant 0 : index
    %c8 = arith.constant 8 : index
    %19 = vector.load %arg8[%c0_15, %c8] : memref<8x48xf32, #tpu.memory_space<vmem>>, vector<8x4xf32>
    tpu.vector_store %arg8[%c0_15, %c8], %6 {strides = array<i32>} : memref<8x48xf32, #tpu.memory_space<vmem>>, vector<8x4xf32>,
    %c0_16 = arith.constant 0 : index
    %c12 = arith.constant 12 : index
    %20 = vector.load %arg8[%c0_16, %c12] : memref<8x48xf32, #tpu.memory_space<vmem>>, vector<8x4xf32>
    tpu.vector_store %arg8[%c0_16, %c12], %9 {strides = array<i32>} : memref<8x48xf32, #tpu.memory_space<vmem>>, vector<8x4xf32>,
    %c0_17 = arith.constant 0 : index
    %c16 = arith.constant 16 : index
    %21 = vector.load %arg8[%c0_17, %c16] : memref<8x48xf32, #tpu.memory_space<vmem>>, vector<8x4xf32>
    tpu.vector_store %arg8[%c0_17, %c16], %12 {strides = array<i32>} : memref<8x48xf32, #tpu.memory_space<vmem>>, vector<8x4xf32>,
    %c0_18 = arith.constant 0 : index
    %c20 = arith.constant 20 : index
    %22 = vector.load %arg8[%c0_18, %c20] : memref<8x48xf32, #tpu.memory_space<vmem>>, vector<8x4xf32>
    tpu.vector_store %arg8[%c0_18, %c20], %15 {strides = array<i32>} : memref<8x48xf32, #tpu.memory_space<vmem>>, vector<8x4xf32>,
    %c0_19 = arith.constant 0 : index
    %c0_20 = arith.constant 0 : index
    %23 = vector.load %arg8[%c0_19, %c0_20] : memref<8x48xf32, #tpu.memory_space<vmem>>, vector<8x24xf32>
    %24 = arith.truncf %23 : vector<8x24xf32> to vector<8x24xbf16>
    %c0_21 = arith.constant 0 : index
    %c0_22 = arith.constant 0 : index
    %25 = vector.load %arg2[%c0_21, %c0_22] : memref<24x128xbf16, #tpu.memory_space<vmem>>, vector<24x128xbf16>
    %cst_23 = arith.constant dense<0.000000e+00> : vector<8x128xf32>
    %26 = tpu.matmul %24, %25, %cst_23 {dimension_numbers = #tpu.dot_dimension_numbers<[1], [0], [0], [1], [0, 0, 1, 1], [], []>} : vector<8x24xbf16>, vector<24x128xbf16>, vector<8x128xf32> -> vector<8x128xf32>
    %c0_24 = arith.constant 0 : index
    %c0_25 = arith.constant 0 : index
    %27 = vector.load %arg3[%c0_24, %c0_25] : memref<1x128xf32, #tpu.memory_space<vmem>>, vector<1x128xf32>
    %28 = vector.broadcast %27 : vector<1x128xf32> to vector<8x128xf32>
    %29 = arith.addf %26, %28 : vector<8x128xf32>
    %c0_26 = arith.constant 0 : index
    %c0_27 = arith.constant 0 : index
    %30 = vector.load %arg7[%c0_26, %c0_27] : memref<8x256xf32, #tpu.memory_space<vmem>>, vector<8x128xf32>
    tpu.vector_store %arg7[%c0_26, %c0_27], %29 {strides = array<i32>} : memref<8x256xf32, #tpu.memory_space<vmem>>, vector<8x128xf32>,
    %c0_28 = arith.constant 0 : index
    %c0_29 = arith.constant 0 : index
    %c0_30 = arith.constant 0 : index
    %c0_31 = arith.constant 0 : index
    %31 = vector.load %arg4[%c0_28, %c0_29, %c0_30, %c0_31] : memref<8x12x16x8xf32, #tpu.memory_space<vmem>>, vector<8x12x16x8xf32>
    %32 = vector.extract_strided_slice %31 {offsets = [0, 0, 0, 0], sizes = [8, 6, 16, 8], strides = [1, 1, 1, 1]} : vector<8x12x16x8xf32> to vector<8x6x16x8xf32>
    %cst_32 = arith.constant dense<0xFF800000> : vector<8x16x8xf32>
    %33 = vector.multi_reduction <maximumf>, %32, %cst_32 [1] : vector<8x6x16x8xf32> to vector<8x16x8xf32>
    %cst_33 = arith.constant dense<0xFF800000> : vector<8x8xf32>
    %34 = vector.multi_reduction <maximumf>, %33, %cst_33 [1] : vector<8x16x8xf32> to vector<8x8xf32>
    %35 = vector.extract_strided_slice %31 {offsets = [0, 6, 0, 0], sizes = [8, 6, 16, 8], strides = [1, 1, 1, 1]} : vector<8x12x16x8xf32> to vector<8x6x16x8xf32>
    %cst_34 = arith.constant dense<0xFF800000> : vector<8x16x8xf32>
    %36 = vector.multi_reduction <maximumf>, %35, %cst_34 [1] : vector<8x6x16x8xf32> to vector<8x16x8xf32>
    %cst_35 = arith.constant dense<0xFF800000> : vector<8x8xf32>
    %37 = vector.multi_reduction <maximumf>, %36, %cst_35 [1] : vector<8x16x8xf32> to vector<8x8xf32>
    %38 = vector.extract_strided_slice %31 {offsets = [0, 0, 0, 0], sizes = [8, 4, 16, 8], strides = [1, 1, 1, 1]} : vector<8x12x16x8xf32> to vector<8x4x16x8xf32>
    %cst_36 = arith.constant dense<0xFF800000> : vector<8x16x8xf32>
    %39 = vector.multi_reduction <maximumf>, %38, %cst_36 [1] : vector<8x4x16x8xf32> to vector<8x16x8xf32>
    %cst_37 = arith.constant dense<0xFF800000> : vector<8x8xf32>
    %40 = vector.multi_reduction <maximumf>, %39, %cst_37 [1] : vector<8x16x8xf32> to vector<8x8xf32>
    %41 = vector.extract_strided_slice %31 {offsets = [0, 4, 0, 0], sizes = [8, 4, 16, 8], strides = [1, 1, 1, 1]} : vector<8x12x16x8xf32> to vector<8x4x16x8xf32>
    %cst_38 = arith.constant dense<0xFF800000> : vector<8x16x8xf32>
    %42 = vector.multi_reduction <maximumf>, %41, %cst_38 [1] : vector<8x4x16x8xf32> to vector<8x16x8xf32>
    %cst_39 = arith.constant dense<0xFF800000> : vector<8x8xf32>
    %43 = vector.multi_reduction <maximumf>, %42, %cst_39 [1] : vector<8x16x8xf32> to vector<8x8xf32>
    %44 = vector.extract_strided_slice %31 {offsets = [0, 8, 0, 0], sizes = [8, 4, 16, 8], strides = [1, 1, 1, 1]} : vector<8x12x16x8xf32> to vector<8x4x16x8xf32>
    %cst_40 = arith.constant dense<0xFF800000> : vector<8x16x8xf32>
    %45 = vector.multi_reduction <maximumf>, %44, %cst_40 [1] : vector<8x4x16x8xf32> to vector<8x16x8xf32>
    %cst_41 = arith.constant dense<0xFF800000> : vector<8x8xf32>
    %46 = vector.multi_reduction <maximumf>, %45, %cst_41 [1] : vector<8x16x8xf32> to vector<8x8xf32>
    %47 = arith.maximumf %34, %37 : vector<8x8xf32>
    %c0_42 = arith.constant 0 : index
    %c0_43 = arith.constant 0 : index
    %48 = vector.load %arg8[%c0_42, %c0_43] : memref<8x48xf32, #tpu.memory_space<vmem>>, vector<8x8xf32>
    tpu.vector_store %arg8[%c0_42, %c0_43], %47 {strides = array<i32>} : memref<8x48xf32, #tpu.memory_space<vmem>>, vector<8x8xf32>,
    %c0_44 = arith.constant 0 : index
    %c8_45 = arith.constant 8 : index
    %49 = vector.load %arg8[%c0_44, %c8_45] : memref<8x48xf32, #tpu.memory_space<vmem>>, vector<8x8xf32>
    tpu.vector_store %arg8[%c0_44, %c8_45], %34 {strides = array<i32>} : memref<8x48xf32, #tpu.memory_space<vmem>>, vector<8x8xf32>,
    %c0_46 = arith.constant 0 : index
    %c16_47 = arith.constant 16 : index
    %50 = vector.load %arg8[%c0_46, %c16_47] : memref<8x48xf32, #tpu.memory_space<vmem>>, vector<8x8xf32>
    tpu.vector_store %arg8[%c0_46, %c16_47], %37 {strides = array<i32>} : memref<8x48xf32, #tpu.memory_space<vmem>>, vector<8x8xf32>,
    %c0_48 = arith.constant 0 : index
    %c24 = arith.constant 24 : index
    %51 = vector.load %arg8[%c0_48, %c24] : memref<8x48xf32, #tpu.memory_space<vmem>>, vector<8x8xf32>
    tpu.vector_store %arg8[%c0_48, %c24], %40 {strides = array<i32>} : memref<8x48xf32, #tpu.memory_space<vmem>>, vector<8x8xf32>,
    %c0_49 = arith.constant 0 : index
    %c32 = arith.constant 32 : index
    %52 = vector.load %arg8[%c0_49, %c32] : memref<8x48xf32, #tpu.memory_space<vmem>>, vector<8x8xf32>
    tpu.vector_store %arg8[%c0_49, %c32], %43 {strides = array<i32>} : memref<8x48xf32, #tpu.memory_space<vmem>>, vector<8x8xf32>,
    %c0_50 = arith.constant 0 : index
    %c40 = arith.constant 40 : index
    %53 = vector.load %arg8[%c0_50, %c40] : memref<8x48xf32, #tpu.memory_space<vmem>>, vector<8x8xf32>
    tpu.vector_store %arg8[%c0_50, %c40], %46 {strides = array<i32>} : memref<8x48xf32, #tpu.memory_space<vmem>>, vector<8x8xf32>,
    %c0_51 = arith.constant 0 : index
    %c0_52 = arith.constant 0 : index
    %54 = vector.load %arg8[%c0_51, %c0_52] : memref<8x48xf32, #tpu.memory_space<vmem>>, vector<8x48xf32>
    %55 = arith.truncf %54 : vector<8x48xf32> to vector<8x48xbf16>
    %c0_53 = arith.constant 0 : index
    %c0_54 = arith.constant 0 : index
    %56 = vector.load %arg5[%c0_53, %c0_54] : memref<48x128xbf16, #tpu.memory_space<vmem>>, vector<48x128xbf16>
    %cst_55 = arith.constant dense<0.000000e+00> : vector<8x128xf32>
    %57 = tpu.matmul %55, %56, %cst_55 {dimension_numbers = #tpu.dot_dimension_numbers<[1], [0], [0], [1], [0, 0, 1, 1], [], []>} : vector<8x48xbf16>, vector<48x128xbf16>, vector<8x128xf32> -> vector<8x128xf32>
    %c0_56 = arith.constant 0 : index
    %c0_57 = arith.constant 0 : index
    %58 = vector.load %arg6[%c0_56, %c0_57] : memref<1x128xf32, #tpu.memory_space<vmem>>, vector<1x128xf32>
    %59 = vector.broadcast %58 : vector<1x128xf32> to vector<8x128xf32>
    %60 = arith.addf %57, %59 : vector<8x128xf32>
    %c0_58 = arith.constant 0 : index
    %c128 = arith.constant 128 : index
    %61 = vector.load %arg7[%c0_58, %c128] : memref<8x256xf32, #tpu.memory_space<vmem>>, vector<8x128xf32>
    tpu.vector_store %arg7[%c0_58, %c128], %60 {strides = array<i32>} : memref<8x256xf32, #tpu.memory_space<vmem>>, vector<8x128xf32>,
    return
  }
  func.func @transform_0(%arg0: i32) -> (i32, i32, i32, i32) {
    %c0_i32 = arith.constant 0 : i32
    %c0_i32_0 = arith.constant 0 : i32
    %c0_i32_1 = arith.constant 0 : i32
    %c0_i32_2 = arith.constant 0 : i32
    return %arg0, %c0_i32, %c0_i32_0, %c0_i32_1 : i32, i32, i32, i32
  }
  func.func @transform_1(%arg0: i32) -> (i32, i32) {
    %c0_i32 = arith.constant 0 : i32
    %c0_i32_0 = arith.constant 0 : i32
    %c0_i32_1 = arith.constant 0 : i32
    return %c0_i32, %c0_i32_0 : i32, i32
  }
  func.func @transform_2(%arg0: i32) -> (i32, i32) {
    %c0_i32 = arith.constant 0 : i32
    %c0_i32_0 = arith.constant 0 : i32
    %c0_i32_1 = arith.constant 0 : i32
    return %c0_i32, %c0_i32_0 : i32, i32
  }
  func.func @transform_3(%arg0: i32) -> (i32, i32, i32, i32) {
    %c0_i32 = arith.constant 0 : i32
    %c0_i32_0 = arith.constant 0 : i32
    %c0_i32_1 = arith.constant 0 : i32
    %c0_i32_2 = arith.constant 0 : i32
    return %arg0, %c0_i32, %c0_i32_0, %c0_i32_1 : i32, i32, i32, i32
  }
  func.func @transform_4(%arg0: i32) -> (i32, i32) {
    %c0_i32 = arith.constant 0 : i32
    %c0_i32_0 = arith.constant 0 : i32
    %c0_i32_1 = arith.constant 0 : i32
    return %c0_i32, %c0_i32_0 : i32, i32
  }
  func.func @transform_5(%arg0: i32) -> (i32, i32) {
    %c0_i32 = arith.constant 0 : i32
    %c0_i32_0 = arith.constant 0 : i32
    %c0_i32_1 = arith.constant 0 : i32
    return %c0_i32, %c0_i32_0 : i32, i32
  }
  func.func @transform_6(%arg0: i32) -> (i32, i32) {
    %c0_i32 = arith.constant 0 : i32
    %c0_i32_0 = arith.constant 0 : i32
    return %arg0, %c0_i32 : i32, i32
  }
}

</mosaic_0001>

<llo_original>
// kernel: tpu_custom_call.1
$region0: #{tpu_custom_call.1}
  #allocation0 [shape = 'u32[]', space=smem, size = 0x4, offset = 0x4, fixed_abs, tag = 'smem constant byte address 0x4 - core index']
  #allocation1 [shape = 'u32[144,128]{1,0:T(1,128)}', space=vmem, size = 0x12000, scoped, tag = 'internal scratch']
  #allocation2 [shape = 'f32[8,48]{1,0:T(8,128)}', space=vmem, size = 0x1000, scoped, tag = 'scratch operand']
  %s0 = inlined_call_operand.vmem [shape: f32[16,12,16,4], index: 0, kind: input, shape index: {}]
  %s1 = inlined_call_operand.vmem [shape: bf16[24,128], index: 1, kind: input, shape index: {}]
  %s2 = inlined_call_operand.vmem [shape: f32[1,128], index: 2, kind: input, shape index: {}]
  %s3 = inlined_call_operand.vmem [shape: f32[16,12,16,8], index: 3, kind: input, shape index: {}]
  %s4 = inlined_call_operand.vmem [shape: bf16[48,128], index: 4, kind: input, shape index: {}]
  %s5 = inlined_call_operand.vmem [shape: f32[1,128], index: 5, kind: input, shape index: {}]
  %s6 = inlined_call_operand.hbm [shape: f32[16,256], index: 6, kind: output, shape index: {}]
  %s7 = sld [smem:[#allocation0]]
  $region57: #{tpu_custom_call.1} parent=0
    _
  %s9 = ssub.s32 1, %s7
  %s10 = scalar_select 0, %s9, %s7
  $region1: #{tpu_custom_call.1} parent=0
    #allocation3 [shape = 'u8[16384]{0}', space=vmem, size = 0x4000, scoped, tag = 'output window, operand 0']
    #allocation4 [shape = 's32[2]{0}', space=sflag, size = 0x8, scoped, tag = 'scoped memory for tpu_custom_call.1']
    %11 = vsyncpa [#allocation4], 0
    %s12 = scalar_lea.sflag [#allocation4], 1
    %13 = vsyncpa %s12, 0
    loop: start=0, step=1, limit=4
    $region2: #{tpu_custom_call.1} parent=1 // loop_pre_header
      _
    $region3: #{tpu_custom_call.1} parent=1 // loop_header
      %s15 = sphi 0, %s19
      %p16 = scmp.ge.s32.totalorder %s15, 4
      %s25 = sphi 0, %s27
      %s28 = sphi 0, %s25
      %s29 = sphi 0, %s28
      %s45 = sphi 0, %s29
      %s49 = sphi 0, %s49
      %s51 = sphi 0, %s49
      %s52 = sphi 0, %s51
      %s66 = sphi 0, %s52
      %s70 = sphi 0, %s70
      %s72 = sphi 0, %s70
      %s73 = sphi 0, %s72
      %s87 = sphi 0, %s73
      %s93 = sphi 0, %s95
      %s96 = sphi 0, %s93
      %s97 = sphi 0, %s96
      %s113 = sphi 0, %s97
      %s117 = sphi 0, %s117
      %s119 = sphi 0, %s117
      %s120 = sphi 0, %s119
      %s134 = sphi 0, %s120
      %s138 = sphi 0, %s138
      %s140 = sphi 0, %s138
      %s141 = sphi 0, %s140
      %s155 = sphi 0, %s141
      %s161 = sphi 0, %s163
      %s164 = sphi 0, %s161
      %s165 = sphi 0, %s164
      %s181 = sphi 0, %s165
    $region4: #{tpu_custom_call.1} parent=1 // loop_header_branch
      %18 = sbr.rel (%p16) target = $region8
    $region5: #{tpu_custom_call.1} parent=1 // loop_body
      %s20 = ssub.s32 %s15, 1
      %s21 = ssub.s32 %s15, 2
      %s22 = sadd.s32 %s15, 1
      %s23 = ssub.s32 %s15, %s22
      %p24 = scmp.eq.s32.totalorder %s23, 0
      %s26 = sadd.s32 %s25, 1
      %s27 = scalar_select %p24, %s25, %s26
      %p30 = pneg %p24
      %p31 = scmp.eq.s32.totalorder %s15, 1
      %p32 = por %p30, %p31
      %p33 = scmp.ne.s32.totalorder %s25, %s28
      %p34 = scmp.eq.s32.totalorder %s15, 0
      %p35 = por %p33, %p34
      %p36 = scmp.ne.s32.totalorder %s25, %s28
      %p37 = scmp.eq.s32.totalorder %s20, 1
      %p38 = por %p36, %p37
      %p39 = scmp.ne.s32.totalorder %s28, %s29
      %p40 = scmp.eq.s32.totalorder %s20, 0
      %p41 = por %p39, %p40
      %p42 = scmp.ne.s32.totalorder %s28, %s29
      %p43 = scmp.eq.s32.totalorder %s21, 1
      %p44 = por %p42, %p43
      %p46 = scmp.ne.s32.totalorder %s29, %s45
      %p47 = scmp.eq.s32.totalorder %s21, 0
      %p48 = por %p46, %p47
      %s50 = sadd.s32 %s49, 1
      %p53 = scmp.eq.s32.totalorder %s15, 1
      %p54 = scmp.ne.s32.totalorder %s49, %s51
      %p55 = scmp.eq.s32.totalorder %s15, 0
      %p56 = por %p54, %p55
      %p57 = scmp.ne.s32.totalorder %s49, %s51
      %p58 = scmp.eq.s32.totalorder %s20, 1
      %p59 = por %p57, %p58
      %p60 = scmp.ne.s32.totalorder %s51, %s52
      %p61 = scmp.eq.s32.totalorder %s20, 0
      %p62 = por %p60, %p61
      %p63 = scmp.ne.s32.totalorder %s51, %s52
      %p64 = scmp.eq.s32.totalorder %s21, 1
      %p65 = por %p63, %p64
      %p67 = scmp.ne.s32.totalorder %s52, %s66
      %p68 = scmp.eq.s32.totalorder %s21, 0
      %p69 = por %p67, %p68
      %s71 = sadd.s32 %s70, 1
      %p74 = scmp.eq.s32.totalorder %s15, 1
      %p75 = scmp.ne.s32.totalorder %s70, %s72
      %p76 = scmp.eq.s32.totalorder %s15, 0
      %p77 = por %p75, %p76
      %p78 = scmp.ne.s32.totalorder %s70, %s72
      %p79 = scmp.eq.s32.totalorder %s20, 1
      %p80 = por %p78, %p79
      %p81 = scmp.ne.s32.totalorder %s72, %s73
      %p82 = scmp.eq.s32.totalorder %s20, 0
      %p83 = por %p81, %p82
      %p84 = scmp.ne.s32.totalorder %s72, %s73
      %p85 = scmp.eq.s32.totalorder %s21, 1
      %p86 = por %p84, %p85
      %p88 = scmp.ne.s32.totalorder %s73, %s87
      %p89 = scmp.eq.s32.totalorder %s21, 0
      %p90 = por %p88, %p89
      %s91 = ssub.s32 %s15, %s22
      %p92 = scmp.eq.s32.totalorder %s91, 0
      %s94 = sadd.s32 %s93, 1
      %s95 = scalar_select %p92, %s93, %s94
      %p98 = pneg %p92
      %p99 = scmp.eq.s32.totalorder %s15, 1
      %p100 = por %p98, %p99
      %p101 = scmp.ne.s32.totalorder %s93, %s96
      %p102 = scmp.eq.s32.totalorder %s15, 0
      %p103 = por %p101, %p102
      %p104 = scmp.ne.s32.totalorder %s93, %s96
      %p105 = scmp.eq.s32.totalorder %s20, 1
      %p106 = por %p104, %p105
      %p107 = scmp.ne.s32.totalorder %s96, %s97
      %p108 = scmp.eq.s32.totalorder %s20, 0
      %p109 = por %p107, %p108
      %p110 = scmp.ne.s32.totalorder %s96, %s97
      %p111 = scmp.eq.s32.totalorder %s21, 1
      %p112 = por %p110, %p111
      %p114 = scmp.ne.s32.totalorder %s97, %s113
      %p115 = scmp.eq.s32.totalorder %s21, 0
      %p116 = por %p114, %p115
      %s118 = sadd.s32 %s117, 1
      %p121 = scmp.eq.s32.totalorder %s15, 1
      %p122 = scmp.ne.s32.totalorder %s117, %s119
      %p123 = scmp.eq.s32.totalorder %s15, 0
      %p124 = por %p122, %p123
      %p125 = scmp.ne.s32.totalorder %s117, %s119
      %p126 = scmp.eq.s32.totalorder %s20, 1
      %p127 = por %p125, %p126
      %p128 = scmp.ne.s32.totalorder %s119, %s120
      %p129 = scmp.eq.s32.totalorder %s20, 0
      %p130 = por %p128, %p129
      %p131 = scmp.ne.s32.totalorder %s119, %s120
      %p132 = scmp.eq.s32.totalorder %s21, 1
      %p133 = por %p131, %p132
      %p135 = scmp.ne.s32.totalorder %s120, %s134
      %p136 = scmp.eq.s32.totalorder %s21, 0
      %p137 = por %p135, %p136
      %s139 = sadd.s32 %s138, 1
      %p142 = scmp.eq.s32.totalorder %s15, 1
      %p143 = scmp.ne.s32.totalorder %s138, %s140
      %p144 = scmp.eq.s32.totalorder %s15, 0
      %p145 = por %p143, %p144
      %p146 = scmp.ne.s32.totalorder %s138, %s140
      %p147 = scmp.eq.s32.totalorder %s20, 1
      %p148 = por %p146, %p147
      %p149 = scmp.ne.s32.totalorder %s140, %s141
      %p150 = scmp.eq.s32.totalorder %s20, 0
      %p151 = por %p149, %p150
      %p152 = scmp.ne.s32.totalorder %s140, %s141
      %p153 = scmp.eq.s32.totalorder %s21, 1
      %p154 = por %p152, %p153
      %p156 = scmp.ne.s32.totalorder %s141, %s155
      %p157 = scmp.eq.s32.totalorder %s21, 0
      %p158 = por %p156, %p157
      %s159 = ssub.s32 %s15, %s22
      %p160 = scmp.eq.s32.totalorder %s159, 0
      %s162 = sadd.s32 %s161, 1
      %s163 = scalar_select %p160, %s161, %s162
      %p166 = pneg %p160
      %p167 = scmp.eq.s32.totalorder %s15, 1
      %p168 = por %p166, %p167
      %p169 = scmp.ne.s32.totalorder %s161, %s164
      %p170 = scmp.eq.s32.totalorder %s15, 0
      %p171 = por %p169, %p170
      %p172 = scmp.ne.s32.totalorder %s161, %s164
      %p173 = scmp.eq.s32.totalorder %s20, 1
      %p174 = por %p172, %p173
      %p175 = scmp.ne.s32.totalorder %s164, %s165
      %p176 = scmp.eq.s32.totalorder %s20, 0
      %p177 = por %p175, %p176
      %p178 = scmp.ne.s32.totalorder %s164, %s165
      %p179 = scmp.eq.s32.totalorder %s21, 1
      %p180 = por %p178, %p179
      %p182 = scmp.ne.s32.totalorder %s165, %s181
      %p183 = scmp.eq.s32.totalorder %s21, 0
      %p184 = por %p182, %p183
      %p185 = scmp.le.s32.totalorder 1, %s15
      %p186 = scmp.lt.s32.totalorder %s15, 3
      %p187 = pnand %p185, %p186
      %p188 = pneg %p187
      // Predicated region
      $region9: #{tpu_custom_call.1} parent=5 // pred_check
        _
      $region10: #{tpu_custom_call.1} parent=5 // pred_check_branch
        %190 = sbr.rel (%p187) target = $region12
      $region11: #{tpu_custom_call.1} parent=5 // pred_region
        %s191 = ssub.s32 %s15, 1
        // Predicated region
        $region13: #{tpu_custom_call.1} parent=11 // pred_check
          %p192 = pneg %p62
        $region14: #{tpu_custom_call.1} parent=11 // pred_check_branch
          %194 = sbr.rel (%p192) target = $region16
        $region15: #{tpu_custom_call.1} parent=11 // pred_region
          _
        $region16: #{tpu_custom_call.1} parent=11 // pred_fallthru
          _
        // Predicated region
        $region17: #{tpu_custom_call.1} parent=11 // pred_check
          %p195 = pneg %p83
        $region18: #{tpu_custom_call.1} parent=11 // pred_check_branch
          %197 = sbr.rel (%p195) target = $region20
        $region19: #{tpu_custom_call.1} parent=11 // pred_region
          _
        $region20: #{tpu_custom_call.1} parent=11 // pred_fallthru
          _
        // Predicated region
        $region21: #{tpu_custom_call.1} parent=11 // pred_check
          %p198 = pneg %p130
        $region22: #{tpu_custom_call.1} parent=11 // pred_check_branch
          %200 = sbr.rel (%p198) target = $region24
        $region23: #{tpu_custom_call.1} parent=11 // pred_region
          _
        $region24: #{tpu_custom_call.1} parent=11 // pred_fallthru
          _
        // Predicated region
        $region25: #{tpu_custom_call.1} parent=11 // pred_check
          %p201 = pneg %p151
        $region26: #{tpu_custom_call.1} parent=11 // pred_check_branch
          %203 = sbr.rel (%p201) target = $region28
        $region27: #{tpu_custom_call.1} parent=11 // pred_region
          _
        $region28: #{tpu_custom_call.1} parent=11 // pred_fallthru
          _
      $region12: #{tpu_custom_call.1} parent=5 // pred_fallthru
        _
      %p204 = scmp.lt.s32.totalorder %s15, 2
      // Predicated region
      $region29: #{tpu_custom_call.1} parent=5 // pred_check
        %p205 = pneg %p204
      $region30: #{tpu_custom_call.1} parent=5 // pred_check_branch
        %207 = sbr.rel (%p205) target = $region32
      $region31: #{tpu_custom_call.1} parent=5 // pred_region
        // Predicated region
        $region33: #{tpu_custom_call.1} parent=31 // pred_check
          %p208 = pneg %p35
        $region34: #{tpu_custom_call.1} parent=31 // pred_check_branch
          %210 = sbr.rel (%p208) target = $region36
        $region35: #{tpu_custom_call.1} parent=31 // pred_region
          %s211 = smul.u32 8, %s15
          %p212 = scmp.lt.s32.totalorder %s211, 15
          %s213 = scalar_select %p212, %s211, 15
          %s214 = smul.addr %s213, 24
          %s215 = smul.addr %s214, 8
          %s216 = scalar_lea.vmem %s0, %s215
          %s217 = smul.u32 8, %s15
        $region36: #{tpu_custom_call.1} parent=31 // pred_fallthru
          _
        // Predicated region
        $region37: #{tpu_custom_call.1} parent=31 // pred_check
          %p218 = pneg %p103
        $region38: #{tpu_custom_call.1} parent=31 // pred_check_branch
          %220 = sbr.rel (%p218) target = $region40
        $region39: #{tpu_custom_call.1} parent=31 // pred_region
          %s221 = smul.u32 8, %s15
          %p222 = scmp.lt.s32.totalorder %s221, 15
          %s223 = scalar_select %p222, %s221, 15
          %s224 = smul.addr %s223, 24
          %s225 = smul.addr %s224, 8
          %s226 = scalar_lea.vmem %s3, %s225
          %s227 = smul.u32 8, %s15
        $region40: #{tpu_custom_call.1} parent=31 // pred_fallthru
          _
      $region32: #{tpu_custom_call.1} parent=5 // pred_fallthru
        _
      %p228 = scmp.le.s32.totalorder 1, %s15
      %p229 = scmp.lt.s32.totalorder %s15, 3
      %p230 = pnand %p228, %p229
      %p231 = pneg %p230
      // Predicated region
      $region41: #{tpu_custom_call.1} parent=5 // pred_check
        _
      $region42: #{tpu_custom_call.1} parent=5 // pred_check_branch
        %233 = sbr.rel (%p230) target = $region44
      $region43: #{tpu_custom_call.1} parent=5 // pred_region
        %s234 = ssub.s32 %s15, 1
        %s235 = smul.u32 8, %s20
        %p236 = scmp.lt.s32.totalorder %s235, 15
        %s237 = scalar_select %p236, %s235, 15
        %s238 = smul.addr %s237, 24
        %s239 = smul.addr %s238, 8
        %s240 = scalar_lea.vmem %s0, %s239
        %p241 = pneg %p41
        %p242 = pneg %p38
        %p243 = pneg %p62
        %p244 = pneg %p59
        %p245 = pneg %p83
        %p246 = pneg %p80
        %s247 = smul.u32 8, %s20
        %p248 = scmp.lt.s32.totalorder %s247, 15
        %s249 = scalar_select %p248, %s247, 15
        %s250 = smul.addr %s249, 24
        %s251 = smul.addr %s250, 8
        %s252 = scalar_lea.vmem %s3, %s251
        %p253 = pneg %p109
        %p254 = pneg %p106
        %p255 = pneg %p130
        %p256 = pneg %p127
        %p257 = pneg %p151
        %p258 = pneg %p148
        %p259 = pneg %p177
        %p260 = pneg %p174
        %s261 = sand.u32 %s164, 1
        %s262 = scalar_lea.sflag [#allocation4], %s261
        %s263 = sand.u32 %s164, 1
        %s264 = smul.addr %s263, 16
        %s265 = scalar_lea.vmem [#allocation3], %s264
        %s266 = smul.u32 8, %s20
        %p267 = scmp.lt.s32.totalorder %s266, 15
        %s268 = scalar_select %p267, %s266, 15
        %s269 = smul.addr %s268, 24
        %s270 = smul.addr %s269, 8
        %s271 = scalar_lea.vmem %s0, %s270
        %s272 = smul.u32 8, %s20
        %s273 = smul.u32 8, %s20
        %p274 = scmp.lt.s32.totalorder %s273, 15
        %s275 = scalar_select %p274, %s273, 15
        %s276 = smul.addr %s275, 24
        %s277 = smul.addr %s276, 8
        %s278 = scalar_lea.vmem %s3, %s277
        %s279 = smul.u32 8, %s20
        %v281 = vld [vmem:[%s271] sm:$0xff]
        %v282 = vld [vmem:[%s271 + $0x8] sm:$0xff]
        %v283 = vld [vmem:[%s271 + $0x10] sm:$0xff]
        %v284 = vld [vmem:[%s271 + $0x18] sm:$0xff]
        %v285 = vld [vmem:[%s271 + $0x20] sm:$0xff]
        %v286 = vld [vmem:[%s271 + $0x28] sm:$0xff]
        %v287 = vld [vmem:[%s271 + $0x30] sm:$0xff]
        %v288 = vld [vmem:[%s271 + $0x38] sm:$0xff]
        %v289 = vld [vmem:[%s271 + $0x40] sm:$0xff]
        %v290 = vld [vmem:[%s271 + $0x48] sm:$0xff]
        %v291 = vld [vmem:[%s271 + $0x50] sm:$0xff]
        %v292 = vld [vmem:[%s271 + $0x58] sm:$0xff]
        %v293 = vld [vmem:[%s271 + $0x60] sm:$0xff]
        %v294 = vld [vmem:[%s271 + $0x68] sm:$0xff]
        %v295 = vld [vmem:[%s271 + $0x70] sm:$0xff]
        %v296 = vld [vmem:[%s271 + $0x78] sm:$0xff]
        %v297 = vld [vmem:[%s271 + $0x80] sm:$0xff]
        %v298 = vld [vmem:[%s271 + $0x88] sm:$0xff]
        %v299 = vld [vmem:[%s271 + $0x90] sm:$0xff]
        %v300 = vld [vmem:[%s271 + $0x98] sm:$0xff]
        %v301 = vld [vmem:[%s271 + $0xa0] sm:$0xff]
        %v302 = vld [vmem:[%s271 + $0xa8] sm:$0xff]
        %v303 = vld [vmem:[%s271 + $0xb0] sm:$0xff]
        %v304 = vld [vmem:[%s271 + $0xb8] sm:$0xff]
        %v305 = vld [vmem:[%s271 + $0xc0] sm:$0xff]
        %v306 = vld [vmem:[%s271 + $0xc8] sm:$0xff]
        %v307 = vld [vmem:[%s271 + $0xd0] sm:$0xff]
        %v308 = vld [vmem:[%s271 + $0xd8] sm:$0xff]
        %v309 = vld [vmem:[%s271 + $0xe0] sm:$0xff]
        %v310 = vld [vmem:[%s271 + $0xe8] sm:$0xff]
        %v311 = vld [vmem:[%s271 + $0xf0] sm:$0xff]
        %v312 = vld [vmem:[%s271 + $0xf8] sm:$0xff]
        %v313 = vld [vmem:[%s271 + $0x100] sm:$0xff]
        %v314 = vld [vmem:[%s271 + $0x108] sm:$0xff]
        %v315 = vld [vmem:[%s271 + $0x110] sm:$0xff]
        %v316 = vld [vmem:[%s271 + $0x118] sm:$0xff]
        %v317 = vld [vmem:[%s271 + $0x120] sm:$0xff]
        %v318 = vld [vmem:[%s271 + $0x128] sm:$0xff]
        %v319 = vld [vmem:[%s271 + $0x130] sm:$0xff]
        %v320 = vld [vmem:[%s271 + $0x138] sm:$0xff]
        %v321 = vld [vmem:[%s271 + $0x140] sm:$0xff]
        %v322 = vld [vmem:[%s271 + $0x148] sm:$0xff]
        %v323 = vld [vmem:[%s271 + $0x150] sm:$0xff]
        %v324 = vld [vmem:[%s271 + $0x158] sm:$0xff]
        %v325 = vld [vmem:[%s271 + $0x160] sm:$0xff]
        %v326 = vld [vmem:[%s271 + $0x168] sm:$0xff]
        %v327 = vld [vmem:[%s271 + $0x170] sm:$0xff]
        %v328 = vld [vmem:[%s271 + $0x178] sm:$0xff]
        %v329 = vld [vmem:[%s271 + $0x180] sm:$0xff]
        %v330 = vld [vmem:[%s271 + $0x188] sm:$0xff]
        %v331 = vld [vmem:[%s271 + $0x190] sm:$0xff]
        %v332 = vld [vmem:[%s271 + $0x198] sm:$0xff]
        %v333 = vld [vmem:[%s271 + $0x1a0] sm:$0xff]
        %v334 = vld [vmem:[%s271 + $0x1a8] sm:$0xff]
        %v335 = vld [vmem:[%s271 + $0x1b0] sm:$0xff]
        %v336 = vld [vmem:[%s271 + $0x1b8] sm:$0xff]
        %v337 = vld [vmem:[%s271 + $0x1c0] sm:$0xff]
        %v338 = vld [vmem:[%s271 + $0x1c8] sm:$0xff]
        %v339 = vld [vmem:[%s271 + $0x1d0] sm:$0xff]
        %v340 = vld [vmem:[%s271 + $0x1d8] sm:$0xff]
        %v341 = vld [vmem:[%s271 + $0x1e0] sm:$0xff]
        %v342 = vld [vmem:[%s271 + $0x1e8] sm:$0xff]
        %v343 = vld [vmem:[%s271 + $0x1f0] sm:$0xff]
        %v344 = vld [vmem:[%s271 + $0x1f8] sm:$0xff]
        %v345 = vld [vmem:[%s271 + $0x200] sm:$0xff]
        %v346 = vld [vmem:[%s271 + $0x208] sm:$0xff]
        %v347 = vld [vmem:[%s271 + $0x210] sm:$0xff]
        %v348 = vld [vmem:[%s271 + $0x218] sm:$0xff]
        %v349 = vld [vmem:[%s271 + $0x220] sm:$0xff]
        %v350 = vld [vmem:[%s271 + $0x228] sm:$0xff]
        %v351 = vld [vmem:[%s271 + $0x230] sm:$0xff]
        %v352 = vld [vmem:[%s271 + $0x238] sm:$0xff]
        %v353 = vld [vmem:[%s271 + $0x240] sm:$0xff]
        %v354 = vld [vmem:[%s271 + $0x248] sm:$0xff]
        %v355 = vld [vmem:[%s271 + $0x250] sm:$0xff]
        %v356 = vld [vmem:[%s271 + $0x258] sm:$0xff]
        %v357 = vld [vmem:[%s271 + $0x260] sm:$0xff]
        %v358 = vld [vmem:[%s271 + $0x268] sm:$0xff]
        %v359 = vld [vmem:[%s271 + $0x270] sm:$0xff]
        %v360 = vld [vmem:[%s271 + $0x278] sm:$0xff]
        %v361 = vld [vmem:[%s271 + $0x280] sm:$0xff]
        %v362 = vld [vmem:[%s271 + $0x288] sm:$0xff]
        %v363 = vld [vmem:[%s271 + $0x290] sm:$0xff]
        %v364 = vld [vmem:[%s271 + $0x298] sm:$0xff]
        %v365 = vld [vmem:[%s271 + $0x2a0] sm:$0xff]
        %v366 = vld [vmem:[%s271 + $0x2a8] sm:$0xff]
        %v367 = vld [vmem:[%s271 + $0x2b0] sm:$0xff]
        %v368 = vld [vmem:[%s271 + $0x2b8] sm:$0xff]
        %v369 = vld [vmem:[%s271 + $0x2c0] sm:$0xff]
        %v370 = vld [vmem:[%s271 + $0x2c8] sm:$0xff]
        %v371 = vld [vmem:[%s271 + $0x2d0] sm:$0xff]
        %v372 = vld [vmem:[%s271 + $0x2d8] sm:$0xff]
        %v373 = vld [vmem:[%s271 + $0x2e0] sm:$0xff]
        %v374 = vld [vmem:[%s271 + $0x2e8] sm:$0xff]
        %v375 = vld [vmem:[%s271 + $0x2f0] sm:$0xff]
        %v376 = vld [vmem:[%s271 + $0x2f8] sm:$0xff]
        %v377 = vld [vmem:[%s271 + $0x300] sm:$0xff]
        %v378 = vld [vmem:[%s271 + $0x308] sm:$0xff]
        %v379 = vld [vmem:[%s271 + $0x310] sm:$0xff]
        %v380 = vld [vmem:[%s271 + $0x318] sm:$0xff]
        %v381 = vld [vmem:[%s271 + $0x320] sm:$0xff]
        %v382 = vld [vmem:[%s271 + $0x328] sm:$0xff]
        %v383 = vld [vmem:[%s271 + $0x330] sm:$0xff]
        %v384 = vld [vmem:[%s271 + $0x338] sm:$0xff]
        %v385 = vld [vmem:[%s271 + $0x340] sm:$0xff]
        %v386 = vld [vmem:[%s271 + $0x348] sm:$0xff]
        %v387 = vld [vmem:[%s271 + $0x350] sm:$0xff]
        %v388 = vld [vmem:[%s271 + $0x358] sm:$0xff]
        %v389 = vld [vmem:[%s271 + $0x360] sm:$0xff]
        %v390 = vld [vmem:[%s271 + $0x368] sm:$0xff]
        %v391 = vld [vmem:[%s271 + $0x370] sm:$0xff]
        %v392 = vld [vmem:[%s271 + $0x378] sm:$0xff]
        %v393 = vld [vmem:[%s271 + $0x380] sm:$0xff]
        %v394 = vld [vmem:[%s271 + $0x388] sm:$0xff]
        %v395 = vld [vmem:[%s271 + $0x390] sm:$0xff]
        %v396 = vld [vmem:[%s271 + $0x398] sm:$0xff]
        %v397 = vld [vmem:[%s271 + $0x3a0] sm:$0xff]
        %v398 = vld [vmem:[%s271 + $0x3a8] sm:$0xff]
        %v399 = vld [vmem:[%s271 + $0x3b0] sm:$0xff]
        %v400 = vld [vmem:[%s271 + $0x3b8] sm:$0xff]
        %v401 = vld [vmem:[%s271 + $0x3c0] sm:$0xff]
        %v402 = vld [vmem:[%s271 + $0x3c8] sm:$0xff]
        %v403 = vld [vmem:[%s271 + $0x3d0] sm:$0xff]
        %v404 = vld [vmem:[%s271 + $0x3d8] sm:$0xff]
        %v405 = vld [vmem:[%s271 + $0x3e0] sm:$0xff]
        %v406 = vld [vmem:[%s271 + $0x3e8] sm:$0xff]
        %v407 = vld [vmem:[%s271 + $0x3f0] sm:$0xff]
        %v408 = vld [vmem:[%s271 + $0x3f8] sm:$0xff]
        %v409 = vld [vmem:[%s271 + $0x400] sm:$0xff]
        %v410 = vld [vmem:[%s271 + $0x408] sm:$0xff]
        %v411 = vld [vmem:[%s271 + $0x410] sm:$0xff]
        %v412 = vld [vmem:[%s271 + $0x418] sm:$0xff]
        %v413 = vld [vmem:[%s271 + $0x420] sm:$0xff]
        %v414 = vld [vmem:[%s271 + $0x428] sm:$0xff]
        %v415 = vld [vmem:[%s271 + $0x430] sm:$0xff]
        %v416 = vld [vmem:[%s271 + $0x438] sm:$0xff]
        %v417 = vld [vmem:[%s271 + $0x440] sm:$0xff]
        %v418 = vld [vmem:[%s271 + $0x448] sm:$0xff]
        %v419 = vld [vmem:[%s271 + $0x450] sm:$0xff]
        %v420 = vld [vmem:[%s271 + $0x458] sm:$0xff]
        %v421 = vld [vmem:[%s271 + $0x460] sm:$0xff]
        %v422 = vld [vmem:[%s271 + $0x468] sm:$0xff]
        %v423 = vld [vmem:[%s271 + $0x470] sm:$0xff]
        %v424 = vld [vmem:[%s271 + $0x478] sm:$0xff]
        %v425 = vld [vmem:[%s271 + $0x480] sm:$0xff]
        %v426 = vld [vmem:[%s271 + $0x488] sm:$0xff]
        %v427 = vld [vmem:[%s271 + $0x490] sm:$0xff]
        %v428 = vld [vmem:[%s271 + $0x498] sm:$0xff]
        %v429 = vld [vmem:[%s271 + $0x4a0] sm:$0xff]
        %v430 = vld [vmem:[%s271 + $0x4a8] sm:$0xff]
        %v431 = vld [vmem:[%s271 + $0x4b0] sm:$0xff]
        %v432 = vld [vmem:[%s271 + $0x4b8] sm:$0xff]
        %v433 = vld [vmem:[%s271 + $0x4c0] sm:$0xff]
        %v434 = vld [vmem:[%s271 + $0x4c8] sm:$0xff]
        %v435 = vld [vmem:[%s271 + $0x4d0] sm:$0xff]
        %v436 = vld [vmem:[%s271 + $0x4d8] sm:$0xff]
        %v437 = vld [vmem:[%s271 + $0x4e0] sm:$0xff]
        %v438 = vld [vmem:[%s271 + $0x4e8] sm:$0xff]
        %v439 = vld [vmem:[%s271 + $0x4f0] sm:$0xff]
        %v440 = vld [vmem:[%s271 + $0x4f8] sm:$0xff]
        %v441 = vld [vmem:[%s271 + $0x500] sm:$0xff]
        %v442 = vld [vmem:[%s271 + $0x508] sm:$0xff]
        %v443 = vld [vmem:[%s271 + $0x510] sm:$0xff]
        %v444 = vld [vmem:[%s271 + $0x518] sm:$0xff]
        %v445 = vld [vmem:[%s271 + $0x520] sm:$0xff]
        %v446 = vld [vmem:[%s271 + $0x528] sm:$0xff]
        %v447 = vld [vmem:[%s271 + $0x530] sm:$0xff]
        %v448 = vld [vmem:[%s271 + $0x538] sm:$0xff]
        %v449 = vld [vmem:[%s271 + $0x540] sm:$0xff]
        %v450 = vld [vmem:[%s271 + $0x548] sm:$0xff]
        %v451 = vld [vmem:[%s271 + $0x550] sm:$0xff]
        %v452 = vld [vmem:[%s271 + $0x558] sm:$0xff]
        %v453 = vld [vmem:[%s271 + $0x560] sm:$0xff]
        %v454 = vld [vmem:[%s271 + $0x568] sm:$0xff]
        %v455 = vld [vmem:[%s271 + $0x570] sm:$0xff]
        %v456 = vld [vmem:[%s271 + $0x578] sm:$0xff]
        %v457 = vld [vmem:[%s271 + $0x580] sm:$0xff]
        %v458 = vld [vmem:[%s271 + $0x588] sm:$0xff]
        %v459 = vld [vmem:[%s271 + $0x590] sm:$0xff]
        %v460 = vld [vmem:[%s271 + $0x598] sm:$0xff]
        %v461 = vld [vmem:[%s271 + $0x5a0] sm:$0xff]
        %v462 = vld [vmem:[%s271 + $0x5a8] sm:$0xff]
        %v463 = vld [vmem:[%s271 + $0x5b0] sm:$0xff]
        %v464 = vld [vmem:[%s271 + $0x5b8] sm:$0xff]
        %v465 = vld [vmem:[%s271 + $0x5c0] sm:$0xff]
        %v466 = vld [vmem:[%s271 + $0x5c8] sm:$0xff]
        %v467 = vld [vmem:[%s271 + $0x5d0] sm:$0xff]
        %v468 = vld [vmem:[%s271 + $0x5d8] sm:$0xff]
        %v469 = vld [vmem:[%s271 + $0x5e0] sm:$0xff]
        %v470 = vld [vmem:[%s271 + $0x5e8] sm:$0xff]
        %v471 = vld [vmem:[%s271 + $0x5f0] sm:$0xff]
        %v472 = vld [vmem:[%s271 + $0x5f8] sm:$0xff]
        %vm473 = vcmask 31744
        %v474 = vsel %vm473, %v281, -inf
        %v475 = vsel %vm473, %v283, -inf
        %v476 = vmax.f32 %v474, %v475
        %v477 = vsel %vm473, %v285, -inf
        %v478 = vmax.f32 %v476, %v477
        %v479 = vsel %vm473, %v287, -inf
        %v480 = vmax.f32 %v478, %v479
        %v481 = vsel %vm473, %v289, -inf
        %v482 = vmax.f32 %v480, %v481
        %v483 = vsel %vm473, %v291, -inf
        %v484 = vmax.f32 %v482, %v483
        %v485 = vsel %vm473, %v282, -inf
        %v486 = vsel %vm473, %v284, -inf
        %v487 = vmax.f32 %v485, %v486
        %v488 = vsel %vm473, %v286, -inf
        %v489 = vmax.f32 %v487, %v488
        %v490 = vsel %vm473, %v288, -inf
        %v491 = vmax.f32 %v489, %v490
        %v492 = vsel %vm473, %v290, -inf
        %v493 = vmax.f32 %v491, %v492
        %v494 = vsel %vm473, %v292, -inf
        %v495 = vmax.f32 %v493, %v494
        %v496 = vsel %vm473, %v305, -inf
        %v497 = vsel %vm473, %v307, -inf
        %v498 = vmax.f32 %v496, %v497
        %v499 = vsel %vm473, %v309, -inf
        %v500 = vmax.f32 %v498, %v499
        %v501 = vsel %vm473, %v311, -inf
        %v502 = vmax.f32 %v500, %v501
        %v503 = vsel %vm473, %v313, -inf
        %v504 = vmax.f32 %v502, %v503
        %v505 = vsel %vm473, %v315, -inf
        %v506 = vmax.f32 %v504, %v505
        %v507 = vsel %vm473, %v306, -inf
        %v508 = vsel %vm473, %v308, -inf
        %v509 = vmax.f32 %v507, %v508
        %v510 = vsel %vm473, %v310, -inf
        %v511 = vmax.f32 %v509, %v510
        %v512 = vsel %vm473, %v312, -inf
        %v513 = vmax.f32 %v511, %v512
        %v514 = vsel %vm473, %v314, -inf
        %v515 = vmax.f32 %v513, %v514
        %v516 = vsel %vm473, %v316, -inf
        %v517 = vmax.f32 %v515, %v516
        %v518 = vsel %vm473, %v329, -inf
        %v519 = vsel %vm473, %v331, -inf
        %v520 = vmax.f32 %v518, %v519
        %v521 = vsel %vm473, %v333, -inf
        %v522 = vmax.f32 %v520, %v521
        %v523 = vsel %vm473, %v335, -inf
        %v524 = vmax.f32 %v522, %v523
        %v525 = vsel %vm473, %v337, -inf
        %v526 = vmax.f32 %v524, %v525
        %v527 = vsel %vm473, %v339, -inf
        %v528 = vmax.f32 %v526, %v527
        %v529 = vsel %vm473, %v330, -inf
        %v530 = vsel %vm473, %v332, -inf
        %v531 = vmax.f32 %v529, %v530
        %v532 = vsel %vm473, %v334, -inf
        %v533 = vmax.f32 %v531, %v532
        %v534 = vsel %vm473, %v336, -inf
        %v535 = vmax.f32 %v533, %v534
        %v536 = vsel %vm473, %v338, -inf
        %v537 = vmax.f32 %v535, %v536
        %v538 = vsel %vm473, %v340, -inf
        %v539 = vmax.f32 %v537, %v538
        %v540 = vsel %vm473, %v353, -inf
        %v541 = vsel %vm473, %v355, -inf
        %v542 = vmax.f32 %v540, %v541
        %v543 = vsel %vm473, %v357, -inf
        %v544 = vmax.f32 %v542, %v543
        %v545 = vsel %vm473, %v359, -inf
        %v546 = vmax.f32 %v544, %v545
        %v547 = vsel %vm473, %v361, -inf
        %v548 = vmax.f32 %v546, %v547
        %v549 = vsel %vm473, %v363, -inf
        %v550 = vmax.f32 %v548, %v549
        %v551 = vsel %vm473, %v354, -inf
        %v552 = vsel %vm473, %v356, -inf
        %v553 = vmax.f32 %v551, %v552
        %v554 = vsel %vm473, %v358, -inf
        %v555 = vmax.f32 %v553, %v554
        %v556 = vsel %vm473, %v360, -inf
        %v557 = vmax.f32 %v555, %v556
        %v558 = vsel %vm473, %v362, -inf
        %v559 = vmax.f32 %v557, %v558
        %v560 = vsel %vm473, %v364, -inf
        %v561 = vmax.f32 %v559, %v560
        %v562 = vsel %vm473, %v377, -inf
        %v563 = vsel %vm473, %v379, -inf
        %v564 = vmax.f32 %v562, %v563
        %v565 = vsel %vm473, %v381, -inf
        %v566 = vmax.f32 %v564, %v565
        %v567 = vsel %vm473, %v383, -inf
        %v568 = vmax.f32 %v566, %v567
        %v569 = vsel %vm473, %v385, -inf
        %v570 = vmax.f32 %v568, %v569
        %v571 = vsel %vm473, %v387, -inf
        %v572 = vmax.f32 %v570, %v571
        %v573 = vsel %vm473, %v378, -inf
        %v574 = vsel %vm473, %v380, -inf
        %v575 = vmax.f32 %v573, %v574
        %v576 = vsel %vm473, %v382, -inf
        %v577 = vmax.f32 %v575, %v576
        %v578 = vsel %vm473, %v384, -inf
        %v579 = vmax.f32 %v577, %v578
        %v580 = vsel %vm473, %v386, -inf
        %v581 = vmax.f32 %v579, %v580
        %v582 = vsel %vm473, %v388, -inf
        %v583 = vmax.f32 %v581, %v582
        %v584 = vsel %vm473, %v401, -inf
        %v585 = vsel %vm473, %v403, -inf
        %v586 = vmax.f32 %v584, %v585
        %v587 = vsel %vm473, %v405, -inf
        %v588 = vmax.f32 %v586, %v587
        %v589 = vsel %vm473, %v407, -inf
        %v590 = vmax.f32 %v588, %v589
        %v591 = vsel %vm473, %v409, -inf
        %v592 = vmax.f32 %v590, %v591
        %v593 = vsel %vm473, %v411, -inf
        %v594 = vmax.f32 %v592, %v593
        %v595 = vsel %vm473, %v402, -inf
        %v596 = vsel %vm473, %v404, -inf
        %v597 = vmax.f32 %v595, %v596
        %v598 = vsel %vm473, %v406, -inf
        %v599 = vmax.f32 %v597, %v598
        %v600 = vsel %vm473, %v408, -inf
        %v601 = vmax.f32 %v599, %v600
        %v602 = vsel %vm473, %v410, -inf
        %v603 = vmax.f32 %v601, %v602
        %v604 = vsel %vm473, %v412, -inf
        %v605 = vmax.f32 %v603, %v604
        %v606 = vsel %vm473, %v425, -inf
        %v607 = vsel %vm473, %v427, -inf
        %v608 = vmax.f32 %v606, %v607
        %v609 = vsel %vm473, %v429, -inf
        %v610 = vmax.f32 %v608, %v609
        %v611 = vsel %vm473, %v431, -inf
        %v612 = vmax.f32 %v610, %v611
        %v613 = vsel %vm473, %v433, -inf
        %v614 = vmax.f32 %v612, %v613
        %v615 = vsel %vm473, %v435, -inf
        %v616 = vmax.f32 %v614, %v615
        %v617 = vsel %vm473, %v426, -inf
        %v618 = vsel %vm473, %v428, -inf
        %v619 = vmax.f32 %v617, %v618
        %v620 = vsel %vm473, %v430, -inf
        %v621 = vmax.f32 %v619, %v620
        %v622 = vsel %vm473, %v432, -inf
        %v623 = vmax.f32 %v621, %v622
        %v624 = vsel %vm473, %v434, -inf
        %v625 = vmax.f32 %v623, %v624
        %v626 = vsel %vm473, %v436, -inf
        %v627 = vmax.f32 %v625, %v626
        %v628 = vsel %vm473, %v449, -inf
        %v629 = vsel %vm473, %v451, -inf
        %v630 = vmax.f32 %v628, %v629
        %v631 = vsel %vm473, %v453, -inf
        %v632 = vmax.f32 %v630, %v631
        %v633 = vsel %vm473, %v455, -inf
        %v634 = vmax.f32 %v632, %v633
        %v635 = vsel %vm473, %v457, -inf
        %v636 = vmax.f32 %v634, %v635
        %v637 = vsel %vm473, %v459, -inf
        %v638 = vmax.f32 %v636, %v637
        %v639 = vsel %vm473, %v450, -inf
        %v640 = vsel %vm473, %v452, -inf
        %v641 = vmax.f32 %v639, %v640
        %v642 = vsel %vm473, %v454, -inf
        %v643 = vmax.f32 %v641, %v642
        %v644 = vsel %vm473, %v456, -inf
        %v645 = vmax.f32 %v643, %v644
        %v646 = vsel %vm473, %v458, -inf
        %v647 = vmax.f32 %v645, %v646
        %v648 = vsel %vm473, %v460, -inf
        %v649 = vmax.f32 %v647, %v648
        %v650 = vsel %vm473, %v484, -inf
        %v651 = vsel %vm473, %v495, -inf
        %v652 = vmax.f32 %v650, %v651
        %v653 = vrot.slane %v652, 4
        %v654 = vmax.f32 %v652, %v653
        %v655 = vrot.slane %v654, 2
        %v656 = vmax.f32 %v654, %v655
        %v657 = vrot.slane %v656, 1
        %v658 = vmax.f32 %v656, %v657
        %v659 = vsel %vm473, %v506, -inf
        %v660 = vsel %vm473, %v517, -inf
        %v661 = vmax.f32 %v659, %v660
        %v662 = vrot.slane %v661, 4
        %v663 = vmax.f32 %v661, %v662
        %v664 = vrot.slane %v663, 2
        %v665 = vmax.f32 %v663, %v664
        %v666 = vrot.slane %v665, 1
        %v667 = vmax.f32 %v665, %v666
        %v668 = vsel %vm473, %v528, -inf
        %v669 = vsel %vm473, %v539, -inf
        %v670 = vmax.f32 %v668, %v669
        %v671 = vrot.slane %v670, 4
        %v672 = vmax.f32 %v670, %v671
        %v673 = vrot.slane %v672, 2
        %v674 = vmax.f32 %v672, %v673
        %v675 = vrot.slane %v674, 1
        %v676 = vmax.f32 %v674, %v675
        %v677 = vsel %vm473, %v550, -inf
        %v678 = vsel %vm473, %v561, -inf
        %v679 = vmax.f32 %v677, %v678
        %v680 = vrot.slane %v679, 4
        %v681 = vmax.f32 %v679, %v680
        %v682 = vrot.slane %v681, 2
        %v683 = vmax.f32 %v681, %v682
        %v684 = vrot.slane %v683, 1
        %v685 = vmax.f32 %v683, %v684
        %v686 = vsel %vm473, %v572, -inf
        %v687 = vsel %vm473, %v583, -inf
        %v688 = vmax.f32 %v686, %v687
        %v689 = vrot.slane %v688, 4
        %v690 = vmax.f32 %v688, %v689
        %v691 = vrot.slane %v690, 2
        %v692 = vmax.f32 %v690, %v691
        %v693 = vrot.slane %v692, 1
        %v694 = vmax.f32 %v692, %v693
        %v695 = vsel %vm473, %v594, -inf
        %v696 = vsel %vm473, %v605, -inf
        %v697 = vmax.f32 %v695, %v696
        %v698 = vrot.slane %v697, 4
        %v699 = vmax.f32 %v697, %v698
        %v700 = vrot.slane %v699, 2
        %v701 = vmax.f32 %v699, %v700
        %v702 = vrot.slane %v701, 1
        %v703 = vmax.f32 %v701, %v702
        %v704 = vsel %vm473, %v616, -inf
        %v705 = vsel %vm473, %v627, -inf
        %v706 = vmax.f32 %v704, %v705
        %v707 = vrot.slane %v706, 4
        %v708 = vmax.f32 %v706, %v707
        %v709 = vrot.slane %v708, 2
        %v710 = vmax.f32 %v708, %v709
        %v711 = vrot.slane %v710, 1
        %v712 = vmax.f32 %v710, %v711
        %v713 = vsel %vm473, %v638, -inf
        %v714 = vsel %vm473, %v649, -inf
        %v715 = vmax.f32 %v713, %v714
        %v716 = vrot.slane %v715, 4
        %v717 = vmax.f32 %v715, %v716
        %v718 = vrot.slane %v717, 2
        %v719 = vmax.f32 %v717, %v718
        %v720 = vrot.slane %v719, 1
        %v721 = vmax.f32 %v719, %v720
        %v722 = vsel %vm473, %v293, -inf
        %v723 = vsel %vm473, %v295, -inf
        %v724 = vmax.f32 %v722, %v723
        %v725 = vsel %vm473, %v297, -inf
        %v726 = vmax.f32 %v724, %v725
        %v727 = vsel %vm473, %v299, -inf
        %v728 = vmax.f32 %v726, %v727
        %v729 = vsel %vm473, %v301, -inf
        %v730 = vmax.f32 %v728, %v729
        %v731 = vsel %vm473, %v303, -inf
        %v732 = vmax.f32 %v730, %v731
        %v733 = vsel %vm473, %v294, -inf
        %v734 = vsel %vm473, %v296, -inf
        %v735 = vmax.f32 %v733, %v734
        %v736 = vsel %vm473, %v298, -inf
        %v737 = vmax.f32 %v735, %v736
        %v738 = vsel %vm473, %v300, -inf
        %v739 = vmax.f32 %v737, %v738
        %v740 = vsel %vm473, %v302, -inf
        %v741 = vmax.f32 %v739, %v740
        %v742 = vsel %vm473, %v304, -inf
        %v743 = vmax.f32 %v741, %v742
        %v744 = vsel %vm473, %v317, -inf
        %v745 = vsel %vm473, %v319, -inf
        %v746 = vmax.f32 %v744, %v745
        %v747 = vsel %vm473, %v321, -inf
        %v748 = vmax.f32 %v746, %v747
        %v749 = vsel %vm473, %v323, -inf
        %v750 = vmax.f32 %v748, %v749
        %v751 = vsel %vm473, %v325, -inf
        %v752 = vmax.f32 %v750, %v751
        %v753 = vsel %vm473, %v327, -inf
        %v754 = vmax.f32 %v752, %v753
        %v755 = vsel %vm473, %v318, -inf
        %v756 = vsel %vm473, %v320, -inf
        %v757 = vmax.f32 %v755, %v756
        %v758 = vsel %vm473, %v322, -inf
        %v759 = vmax.f32 %v757, %v758
        %v760 = vsel %vm473, %v324, -inf
        %v761 = vmax.f32 %v759, %v760
        %v762 = vsel %vm473, %v326, -inf
        %v763 = vmax.f32 %v761, %v762
        %v764 = vsel %vm473, %v328, -inf
        %v765 = vmax.f32 %v763, %v764
        %v766 = vsel %vm473, %v341, -inf
        %v767 = vsel %vm473, %v343, -inf
        %v768 = vmax.f32 %v766, %v767
        %v769 = vsel %vm473, %v345, -inf
        %v770 = vmax.f32 %v768, %v769
        %v771 = vsel %vm473, %v347, -inf
        %v772 = vmax.f32 %v770, %v771
        %v773 = vsel %vm473, %v349, -inf
        %v774 = vmax.f32 %v772, %v773
        %v775 = vsel %vm473, %v351, -inf
        %v776 = vmax.f32 %v774, %v775
        %v777 = vsel %vm473, %v342, -inf
        %v778 = vsel %vm473, %v344, -inf
        %v779 = vmax.f32 %v777, %v778
        %v780 = vsel %vm473, %v346, -inf
        %v781 = vmax.f32 %v779, %v780
        %v782 = vsel %vm473, %v348, -inf
        %v783 = vmax.f32 %v781, %v782
        %v784 = vsel %vm473, %v350, -inf
        %v785 = vmax.f32 %v783, %v784
        %v786 = vsel %vm473, %v352, -inf
        %v787 = vmax.f32 %v785, %v786
        %v788 = vsel %vm473, %v365, -inf
        %v789 = vsel %vm473, %v367, -inf
        %v790 = vmax.f32 %v788, %v789
        %v791 = vsel %vm473, %v369, -inf
        %v792 = vmax.f32 %v790, %v791
        %v793 = vsel %vm473, %v371, -inf
        %v794 = vmax.f32 %v792, %v793
        %v795 = vsel %vm473, %v373, -inf
        %v796 = vmax.f32 %v794, %v795
        %v797 = vsel %vm473, %v375, -inf
        %v798 = vmax.f32 %v796, %v797
        %v799 = vsel %vm473, %v366, -inf
        %v800 = vsel %vm473, %v368, -inf
        %v801 = vmax.f32 %v799, %v800
        %v802 = vsel %vm473, %v370, -inf
        %v803 = vmax.f32 %v801, %v802
        %v804 = vsel %vm473, %v372, -inf
        %v805 = vmax.f32 %v803, %v804
        %v806 = vsel %vm473, %v374, -inf
        %v807 = vmax.f32 %v805, %v806
        %v808 = vsel %vm473, %v376, -inf
        %v809 = vmax.f32 %v807, %v808
        %v810 = vsel %vm473, %v389, -inf
        %v811 = vsel %vm473, %v391, -inf
        %v812 = vmax.f32 %v810, %v811
        %v813 = vsel %vm473, %v393, -inf
        %v814 = vmax.f32 %v812, %v813
        %v815 = vsel %vm473, %v395, -inf
        %v816 = vmax.f32 %v814, %v815
        %v817 = vsel %vm473, %v397, -inf
        %v818 = vmax.f32 %v816, %v817
        %v819 = vsel %vm473, %v399, -inf
        %v820 = vmax.f32 %v818, %v819
        %v821 = vsel %vm473, %v390, -inf
        %v822 = vsel %vm473, %v392, -inf
        %v823 = vmax.f32 %v821, %v822
        %v824 = vsel %vm473, %v394, -inf
        %v825 = vmax.f32 %v823, %v824
        %v826 = vsel %vm473, %v396, -inf
        %v827 = vmax.f32 %v825, %v826
        %v828 = vsel %vm473, %v398, -inf
        %v829 = vmax.f32 %v827, %v828
        %v830 = vsel %vm473, %v400, -inf
        %v831 = vmax.f32 %v829, %v830
        %v832 = vsel %vm473, %v413, -inf
        %v833 = vsel %vm473, %v415, -inf
        %v834 = vmax.f32 %v832, %v833
        %v835 = vsel %vm473, %v417, -inf
        %v836 = vmax.f32 %v834, %v835
        %v837 = vsel %vm473, %v419, -inf
        %v838 = vmax.f32 %v836, %v837
        %v839 = vsel %vm473, %v421, -inf
        %v840 = vmax.f32 %v838, %v839
        %v841 = vsel %vm473, %v423, -inf
        %v842 = vmax.f32 %v840, %v841
        %v843 = vsel %vm473, %v414, -inf
        %v844 = vsel %vm473, %v416, -inf
        %v845 = vmax.f32 %v843, %v844
        %v846 = vsel %vm473, %v418, -inf
        %v847 = vmax.f32 %v845, %v846
        %v848 = vsel %vm473, %v420, -inf
        %v849 = vmax.f32 %v847, %v848
        %v850 = vsel %vm473, %v422, -inf
        %v851 = vmax.f32 %v849, %v850
        %v852 = vsel %vm473, %v424, -inf
        %v853 = vmax.f32 %v851, %v852
        %v854 = vsel %vm473, %v437, -inf
        %v855 = vsel %vm473, %v439, -inf
        %v856 = vmax.f32 %v854, %v855
        %v857 = vsel %vm473, %v441, -inf
        %v858 = vmax.f32 %v856, %v857
        %v859 = vsel %vm473, %v443, -inf
        %v860 = vmax.f32 %v858, %v859
        %v861 = vsel %vm473, %v445, -inf
        %v862 = vmax.f32 %v860, %v861
        %v863 = vsel %vm473, %v447, -inf
        %v864 = vmax.f32 %v862, %v863
        %v865 = vsel %vm473, %v438, -inf
        %v866 = vsel %vm473, %v440, -inf
        %v867 = vmax.f32 %v865, %v866
        %v868 = vsel %vm473, %v442, -inf
        %v869 = vmax.f32 %v867, %v868
        %v870 = vsel %vm473, %v444, -inf
        %v871 = vmax.f32 %v869, %v870
        %v872 = vsel %vm473, %v446, -inf
        %v873 = vmax.f32 %v871, %v872
        %v874 = vsel %vm473, %v448, -inf
        %v875 = vmax.f32 %v873, %v874
        %v876 = vsel %vm473, %v461, -inf
        %v877 = vsel %vm473, %v463, -inf
        %v878 = vmax.f32 %v876, %v877
        %v879 = vsel %vm473, %v465, -inf
        %v880 = vmax.f32 %v878, %v879
        %v881 = vsel %vm473, %v467, -inf
        %v882 = vmax.f32 %v880, %v881
        %v883 = vsel %vm473, %v469, -inf
        %v884 = vmax.f32 %v882, %v883
        %v885 = vsel %vm473, %v471, -inf
        %v886 = vmax.f32 %v884, %v885
        %v887 = vsel %vm473, %v462, -inf
        %v888 = vsel %vm473, %v464, -inf
        %v889 = vmax.f32 %v887, %v888
        %v890 = vsel %vm473, %v466, -inf
        %v891 = vmax.f32 %v889, %v890
        %v892 = vsel %vm473, %v468, -inf
        %v893 = vmax.f32 %v891, %v892
        %v894 = vsel %vm473, %v470, -inf
        %v895 = vmax.f32 %v893, %v894
        %v896 = vsel %vm473, %v472, -inf
        %v897 = vmax.f32 %v895, %v896
        %v898 = vsel %vm473, %v732, -inf
        %v899 = vsel %vm473, %v743, -inf
        %v900 = vmax.f32 %v898, %v899
        %v901 = vrot.slane %v900, 4
        %v902 = vmax.f32 %v900, %v901
        %v903 = vrot.slane %v902, 2
        %v904 = vmax.f32 %v902, %v903
        %v905 = vrot.slane %v904, 1
        %v906 = vmax.f32 %v904, %v905
        %v907 = vsel %vm473, %v754, -inf
        %v908 = vsel %vm473, %v765, -inf
        %v909 = vmax.f32 %v907, %v908
        %v910 = vrot.slane %v909, 4
        %v911 = vmax.f32 %v909, %v910
        %v912 = vrot.slane %v911, 2
        %v913 = vmax.f32 %v911, %v912
        %v914 = vrot.slane %v913, 1
        %v915 = vmax.f32 %v913, %v914
        %v916 = vsel %vm473, %v776, -inf
        %v917 = vsel %vm473, %v787, -inf
        %v918 = vmax.f32 %v916, %v917
        %v919 = vrot.slane %v918, 4
        %v920 = vmax.f32 %v918, %v919
        %v921 = vrot.slane %v920, 2
        %v922 = vmax.f32 %v920, %v921
        %v923 = vrot.slane %v922, 1
        %v924 = vmax.f32 %v922, %v923
        %v925 = vsel %vm473, %v798, -inf
        %v926 = vsel %vm473, %v809, -inf
        %v927 = vmax.f32 %v925, %v926
        %v928 = vrot.slane %v927, 4
        %v929 = vmax.f32 %v927, %v928
        %v930 = vrot.slane %v929, 2
        %v931 = vmax.f32 %v929, %v930
        %v932 = vrot.slane %v931, 1
        %v933 = vmax.f32 %v931, %v932
        %v934 = vsel %vm473, %v820, -inf
        %v935 = vsel %vm473, %v831, -inf
        %v936 = vmax.f32 %v934, %v935
        %v937 = vrot.slane %v936, 4
        %v938 = vmax.f32 %v936, %v937
        %v939 = vrot.slane %v938, 2
        %v940 = vmax.f32 %v938, %v939
        %v941 = vrot.slane %v940, 1
        %v942 = vmax.f32 %v940, %v941
        %v943 = vsel %vm473, %v842, -inf
        %v944 = vsel %vm473, %v853, -inf
        %v945 = vmax.f32 %v943, %v944
        %v946 = vrot.slane %v945, 4
        %v947 = vmax.f32 %v945, %v946
        %v948 = vrot.slane %v947, 2
        %v949 = vmax.f32 %v947, %v948
        %v950 = vrot.slane %v949, 1
        %v951 = vmax.f32 %v949, %v950
        %v952 = vsel %vm473, %v864, -inf
        %v953 = vsel %vm473, %v875, -inf
        %v954 = vmax.f32 %v952, %v953
        %v955 = vrot.slane %v954, 4
        %v956 = vmax.f32 %v954, %v955
        %v957 = vrot.slane %v956, 2
        %v958 = vmax.f32 %v956, %v957
        %v959 = vrot.slane %v958, 1
        %v960 = vmax.f32 %v958, %v959
        %v961 = vsel %vm473, %v886, -inf
        %v962 = vsel %vm473, %v897, -inf
        %v963 = vmax.f32 %v961, %v962
        %v964 = vrot.slane %v963, 4
        %v965 = vmax.f32 %v963, %v964
        %v966 = vrot.slane %v965, 2
        %v967 = vmax.f32 %v965, %v966
        %v968 = vrot.slane %v967, 1
        %v969 = vmax.f32 %v967, %v968
        %v970 = vsel %vm473, %v480, -inf
        %v971 = vsel %vm473, %v491, -inf
        %v972 = vmax.f32 %v970, %v971
        %v973 = vrot.slane %v972, 4
        %v974 = vmax.f32 %v972, %v973
        %v975 = vrot.slane %v974, 2
        %v976 = vmax.f32 %v974, %v975
        %v977 = vrot.slane %v976, 1
        %v978 = vmax.f32 %v976, %v977
        %v979 = vsel %vm473, %v502, -inf
        %v980 = vsel %vm473, %v513, -inf
        %v981 = vmax.f32 %v979, %v980
        %v982 = vrot.slane %v981, 4
        %v983 = vmax.f32 %v981, %v982
        %v984 = vrot.slane %v983, 2
        %v985 = vmax.f32 %v983, %v984
        %v986 = vrot.slane %v985, 1
        %v987 = vmax.f32 %v985, %v986
        %v988 = vsel %vm473, %v524, -inf
        %v989 = vsel %vm473, %v535, -inf
        %v990 = vmax.f32 %v988, %v989
        %v991 = vrot.slane %v990, 4
        %v992 = vmax.f32 %v990, %v991
        %v993 = vrot.slane %v992, 2
        %v994 = vmax.f32 %v992, %v993
        %v995 = vrot.slane %v994, 1
        %v996 = vmax.f32 %v994, %v995
        %v997 = vsel %vm473, %v546, -inf
        %v998 = vsel %vm473, %v557, -inf
        %v999 = vmax.f32 %v997, %v998
        %v1000 = vrot.slane %v999, 4
        %v1001 = vmax.f32 %v999, %v1000
        %v1002 = vrot.slane %v1001, 2
        %v1003 = vmax.f32 %v1001, %v1002
        %v1004 = vrot.slane %v1003, 1
        %v1005 = vmax.f32 %v1003, %v1004
        %v1006 = vsel %vm473, %v568, -inf
        %v1007 = vsel %vm473, %v579, -inf
        %v1008 = vmax.f32 %v1006, %v1007
        %v1009 = vrot.slane %v1008, 4
        %v1010 = vmax.f32 %v1008, %v1009
        %v1011 = vrot.slane %v1010, 2
        %v1012 = vmax.f32 %v1010, %v1011
        %v1013 = vrot.slane %v1012, 1
        %v1014 = vmax.f32 %v1012, %v1013
        %v1015 = vsel %vm473, %v590, -inf
        %v1016 = vsel %vm473, %v601, -inf
        %v1017 = vmax.f32 %v1015, %v1016
        %v1018 = vrot.slane %v1017, 4
        %v1019 = vmax.f32 %v1017, %v1018
        %v1020 = vrot.slane %v1019, 2
        %v1021 = vmax.f32 %v1019, %v1020
        %v1022 = vrot.slane %v1021, 1
        %v1023 = vmax.f32 %v1021, %v1022
        %v1024 = vsel %vm473, %v612, -inf
        %v1025 = vsel %vm473, %v623, -inf
        %v1026 = vmax.f32 %v1024, %v1025
        %v1027 = vrot.slane %v1026, 4
        %v1028 = vmax.f32 %v1026, %v1027
        %v1029 = vrot.slane %v1028, 2
        %v1030 = vmax.f32 %v1028, %v1029
        %v1031 = vrot.slane %v1030, 1
        %v1032 = vmax.f32 %v1030, %v1031
        %v1033 = vsel %vm473, %v634, -inf
        %v1034 = vsel %vm473, %v645, -inf
        %v1035 = vmax.f32 %v1033, %v1034
        %v1036 = vrot.slane %v1035, 4
        %v1037 = vmax.f32 %v1035, %v1036
        %v1038 = vrot.slane %v1037, 2
        %v1039 = vmax.f32 %v1037, %v1038
        %v1040 = vrot.slane %v1039, 1
        %v1041 = vmax.f32 %v1039, %v1040
        %v1042 = vmax.f32 %v481, %v483
        %v1043 = vmax.f32 %v1042, %v722
        %v1044 = vmax.f32 %v1043, %v723
        %v1045 = vmax.f32 %v492, %v494
        %v1046 = vmax.f32 %v1045, %v733
        %v1047 = vmax.f32 %v1046, %v734
        %v1048 = vmax.f32 %v503, %v505
        %v1049 = vmax.f32 %v1048, %v744
        %v1050 = vmax.f32 %v1049, %v745
        %v1051 = vmax.f32 %v514, %v516
        %v1052 = vmax.f32 %v1051, %v755
        %v1053 = vmax.f32 %v1052, %v756
        %v1054 = vmax.f32 %v525, %v527
        %v1055 = vmax.f32 %v1054, %v766
        %v1056 = vmax.f32 %v1055, %v767
        %v1057 = vmax.f32 %v536, %v538
        %v1058 = vmax.f32 %v1057, %v777
        %v1059 = vmax.f32 %v1058, %v778
        %v1060 = vmax.f32 %v547, %v549
        %v1061 = vmax.f32 %v1060, %v788
        %v1062 = vmax.f32 %v1061, %v789
        %v1063 = vmax.f32 %v558, %v560
        %v1064 = vmax.f32 %v1063, %v799
        %v1065 = vmax.f32 %v1064, %v800
        %v1066 = vmax.f32 %v569, %v571
        %v1067 = vmax.f32 %v1066, %v810
        %v1068 = vmax.f32 %v1067, %v811
        %v1069 = vmax.f32 %v580, %v582
        %v1070 = vmax.f32 %v1069, %v821
        %v1071 = vmax.f32 %v1070, %v822
        %v1072 = vmax.f32 %v591, %v593
        %v1073 = vmax.f32 %v1072, %v832
        %v1074 = vmax.f32 %v1073, %v833
        %v1075 = vmax.f32 %v602, %v604
        %v1076 = vmax.f32 %v1075, %v843
        %v1077 = vmax.f32 %v1076, %v844
        %v1078 = vmax.f32 %v613, %v615
        %v1079 = vmax.f32 %v1078, %v854
        %v1080 = vmax.f32 %v1079, %v855
        %v1081 = vmax.f32 %v624, %v626
        %v1082 = vmax.f32 %v1081, %v865
        %v1083 = vmax.f32 %v1082, %v866
        %v1084 = vmax.f32 %v635, %v637
        %v1085 = vmax.f32 %v1084, %v876
        %v1086 = vmax.f32 %v1085, %v877
        %v1087 = vmax.f32 %v646, %v648
        %v1088 = vmax.f32 %v1087, %v887
        %v1089 = vmax.f32 %v1088, %v888
        %v1090 = vsel %vm473, %v1044, -inf
        %v1091 = vsel %vm473, %v1047, -inf
        %v1092 = vmax.f32 %v1090, %v1091
        %v1093 = vrot.slane %v1092, 4
        %v1094 = vmax.f32 %v1092, %v1093
        %v1095 = vrot.slane %v1094, 2
        %v1096 = vmax.f32 %v1094, %v1095
        %v1097 = vrot.slane %v1096, 1
        %v1098 = vmax.f32 %v1096, %v1097
        %v1099 = vsel %vm473, %v1050, -inf
        %v1100 = vsel %vm473, %v1053, -inf
        %v1101 = vmax.f32 %v1099, %v1100
        %v1102 = vrot.slane %v1101, 4
        %v1103 = vmax.f32 %v1101, %v1102
        %v1104 = vrot.slane %v1103, 2
        %v1105 = vmax.f32 %v1103, %v1104
        %v1106 = vrot.slane %v1105, 1
        %v1107 = vmax.f32 %v1105, %v1106
        %v1108 = vsel %vm473, %v1056, -inf
        %v1109 = vsel %vm473, %v1059, -inf
        %v1110 = vmax.f32 %v1108, %v1109
        %v1111 = vrot.slane %v1110, 4
        %v1112 = vmax.f32 %v1110, %v1111
        %v1113 = vrot.slane %v1112, 2
        %v1114 = vmax.f32 %v1112, %v1113
        %v1115 = vrot.slane %v1114, 1
        %v1116 = vmax.f32 %v1114, %v1115
        %v1117 = vsel %vm473, %v1062, -inf
        %v1118 = vsel %vm473, %v1065, -inf
        %v1119 = vmax.f32 %v1117, %v1118
        %v1120 = vrot.slane %v1119, 4
        %v1121 = vmax.f32 %v1119, %v1120
        %v1122 = vrot.slane %v1121, 2
        %v1123 = vmax.f32 %v1121, %v1122
        %v1124 = vrot.slane %v1123, 1
        %v1125 = vmax.f32 %v1123, %v1124
        %v1126 = vsel %vm473, %v1068, -inf
        %v1127 = vsel %vm473, %v1071, -inf
        %v1128 = vmax.f32 %v1126, %v1127
        %v1129 = vrot.slane %v1128, 4
        %v1130 = vmax.f32 %v1128, %v1129
        %v1131 = vrot.slane %v1130, 2
        %v1132 = vmax.f32 %v1130, %v1131
        %v1133 = vrot.slane %v1132, 1
        %v1134 = vmax.f32 %v1132, %v1133
        %v1135 = vsel %vm473, %v1074, -inf
        %v1136 = vsel %vm473, %v1077, -inf
        %v1137 = vmax.f32 %v1135, %v1136
        %v1138 = vrot.slane %v1137, 4
        %v1139 = vmax.f32 %v1137, %v1138
        %v1140 = vrot.slane %v1139, 2
        %v1141 = vmax.f32 %v1139, %v1140
        %v1142 = vrot.slane %v1141, 1
        %v1143 = vmax.f32 %v1141, %v1142
        %v1144 = vsel %vm473, %v1080, -inf
        %v1145 = vsel %vm473, %v1083, -inf
        %v1146 = vmax.f32 %v1144, %v1145
        %v1147 = vrot.slane %v1146, 4
        %v1148 = vmax.f32 %v1146, %v1147
        %v1149 = vrot.slane %v1148, 2
        %v1150 = vmax.f32 %v1148, %v1149
        %v1151 = vrot.slane %v1150, 1
        %v1152 = vmax.f32 %v1150, %v1151
        %v1153 = vsel %vm473, %v1086, -inf
        %v1154 = vsel %vm473, %v1089, -inf
        %v1155 = vmax.f32 %v1153, %v1154
        %v1156 = vrot.slane %v1155, 4
        %v1157 = vmax.f32 %v1155, %v1156
        %v1158 = vrot.slane %v1157, 2
        %v1159 = vmax.f32 %v1157, %v1158
        %v1160 = vrot.slane %v1159, 1
        %v1161 = vmax.f32 %v1159, %v1160
        %v1162 = vmax.f32 %v725, %v727
        %v1163 = vmax.f32 %v1162, %v729
        %v1164 = vmax.f32 %v1163, %v731
        %v1165 = vmax.f32 %v736, %v738
        %v1166 = vmax.f32 %v1165, %v740
        %v1167 = vmax.f32 %v1166, %v742
        %v1168 = vmax.f32 %v747, %v749
        %v1169 = vmax.f32 %v1168, %v751
        %v1170 = vmax.f32 %v1169, %v753
        %v1171 = vmax.f32 %v758, %v760
        %v1172 = vmax.f32 %v1171, %v762
        %v1173 = vmax.f32 %v1172, %v764
        %v1174 = vmax.f32 %v769, %v771
        %v1175 = vmax.f32 %v1174, %v773
        %v1176 = vmax.f32 %v1175, %v775
        %v1177 = vmax.f32 %v780, %v782
        %v1178 = vmax.f32 %v1177, %v784
        %v1179 = vmax.f32 %v1178, %v786
        %v1180 = vmax.f32 %v791, %v793
        %v1181 = vmax.f32 %v1180, %v795
        %v1182 = vmax.f32 %v1181, %v797
        %v1183 = vmax.f32 %v802, %v804
        %v1184 = vmax.f32 %v1183, %v806
        %v1185 = vmax.f32 %v1184, %v808
        %v1186 = vmax.f32 %v813, %v815
        %v1187 = vmax.f32 %v1186, %v817
        %v1188 = vmax.f32 %v1187, %v819
        %v1189 = vmax.f32 %v824, %v826
        %v1190 = vmax.f32 %v1189, %v828
        %v1191 = vmax.f32 %v1190, %v830
        %v1192 = vmax.f32 %v835, %v837
        %v1193 = vmax.f32 %v1192, %v839
        %v1194 = vmax.f32 %v1193, %v841
        %v1195 = vmax.f32 %v846, %v848
        %v1196 = vmax.f32 %v1195, %v850
        %v1197 = vmax.f32 %v1196, %v852
        %v1198 = vmax.f32 %v857, %v859
        %v1199 = vmax.f32 %v1198, %v861
        %v1200 = vmax.f32 %v1199, %v863
        %v1201 = vmax.f32 %v868, %v870
        %v1202 = vmax.f32 %v1201, %v872
        %v1203 = vmax.f32 %v1202, %v874
        %v1204 = vmax.f32 %v879, %v881
        %v1205 = vmax.f32 %v1204, %v883
        %v1206 = vmax.f32 %v1205, %v885
        %v1207 = vmax.f32 %v890, %v892
        %v1208 = vmax.f32 %v1207, %v894
        %v1209 = vmax.f32 %v1208, %v896
        %v1210 = vsel %vm473, %v1164, -inf
        %v1211 = vsel %vm473, %v1167, -inf
        %v1212 = vmax.f32 %v1210, %v1211
        %v1213 = vrot.slane %v1212, 4
        %v1214 = vmax.f32 %v1212, %v1213
        %v1215 = vrot.slane %v1214, 2
        %v1216 = vmax.f32 %v1214, %v1215
        %v1217 = vrot.slane %v1216, 1
        %v1218 = vmax.f32 %v1216, %v1217
        %v1219 = vsel %vm473, %v1170, -inf
        %v1220 = vsel %vm473, %v1173, -inf
        %v1221 = vmax.f32 %v1219, %v1220
        %v1222 = vrot.slane %v1221, 4
        %v1223 = vmax.f32 %v1221, %v1222
        %v1224 = vrot.slane %v1223, 2
        %v1225 = vmax.f32 %v1223, %v1224
        %v1226 = vrot.slane %v1225, 1
        %v1227 = vmax.f32 %v1225, %v1226
        %v1228 = vsel %vm473, %v1176, -inf
        %v1229 = vsel %vm473, %v1179, -inf
        %v1230 = vmax.f32 %v1228, %v1229
        %v1231 = vrot.slane %v1230, 4
        %v1232 = vmax.f32 %v1230, %v1231
        %v1233 = vrot.slane %v1232, 2
        %v1234 = vmax.f32 %v1232, %v1233
        %v1235 = vrot.slane %v1234, 1
        %v1236 = vmax.f32 %v1234, %v1235
        %v1237 = vsel %vm473, %v1182, -inf
        %v1238 = vsel %vm473, %v1185, -inf
        %v1239 = vmax.f32 %v1237, %v1238
        %v1240 = vrot.slane %v1239, 4
        %v1241 = vmax.f32 %v1239, %v1240
        %v1242 = vrot.slane %v1241, 2
        %v1243 = vmax.f32 %v1241, %v1242
        %v1244 = vrot.slane %v1243, 1
        %v1245 = vmax.f32 %v1243, %v1244
        %v1246 = vsel %vm473, %v1188, -inf
        %v1247 = vsel %vm473, %v1191, -inf
        %v1248 = vmax.f32 %v1246, %v1247
        %v1249 = vrot.slane %v1248, 4
        %v1250 = vmax.f32 %v1248, %v1249
        %v1251 = vrot.slane %v1250, 2
        %v1252 = vmax.f32 %v1250, %v1251
        %v1253 = vrot.slane %v1252, 1
        %v1254 = vmax.f32 %v1252, %v1253
        %v1255 = vsel %vm473, %v1194, -inf
        %v1256 = vsel %vm473, %v1197, -inf
        %v1257 = vmax.f32 %v1255, %v1256
        %v1258 = vrot.slane %v1257, 4
        %v1259 = vmax.f32 %v1257, %v1258
        %v1260 = vrot.slane %v1259, 2
        %v1261 = vmax.f32 %v1259, %v1260
        %v1262 = vrot.slane %v1261, 1
        %v1263 = vmax.f32 %v1261, %v1262
        %v1264 = vsel %vm473, %v1200, -inf
        %v1265 = vsel %vm473, %v1203, -inf
        %v1266 = vmax.f32 %v1264, %v1265
        %v1267 = vrot.slane %v1266, 4
        %v1268 = vmax.f32 %v1266, %v1267
        %v1269 = vrot.slane %v1268, 2
        %v1270 = vmax.f32 %v1268, %v1269
        %v1271 = vrot.slane %v1270, 1
        %v1272 = vmax.f32 %v1270, %v1271
        %v1273 = vsel %vm473, %v1206, -inf
        %v1274 = vsel %vm473, %v1209, -inf
        %v1275 = vmax.f32 %v1273, %v1274
        %v1276 = vrot.slane %v1275, 4
        %v1277 = vmax.f32 %v1275, %v1276
        %v1278 = vrot.slane %v1277, 2
        %v1279 = vmax.f32 %v1277, %v1278
        %v1280 = vrot.slane %v1279, 1
        %v1281 = vmax.f32 %v1279, %v1280
        %v1282 = vmax.f32 %v658, %v906
        %v1283 = vmax.f32 %v667, %v915
        %v1284 = vmax.f32 %v676, %v924
        %v1285 = vmax.f32 %v685, %v933
        %v1286 = vmax.f32 %v694, %v942
        %v1287 = vmax.f32 %v703, %v951
        %v1288 = vmax.f32 %v712, %v960
        %v1289 = vmax.f32 %v721, %v969
        %vm1298 = vcmask 1041409
        %v1299 = vsel %vm1298, %v1283, %v1282
        %vm1300 = vcmask 1042434
        %v1301 = vsel %vm1300, %v1284, %v1299
        %vm1302 = vcmask 1043459
        %v1303 = vsel %vm1302, %v1285, %v1301
        %vm1304 = vcmask 1044484
        %v1305 = vsel %vm1304, %v1286, %v1303
        %vm1306 = vcmask 1045509
        %v1307 = vsel %vm1306, %v1287, %v1305
        %vm1308 = vcmask 1046534
        %v1309 = vsel %vm1308, %v1288, %v1307
        %vm1310 = vcmask 1047559
        %v1311 = vsel %vm1310, %v1289, %v1309
        %1313 = vst.msk [vmem:[#allocation2] sm:$0xff] %vm473, %v1311
        %v1322 = vsel %vm1298, %v667, %v658
        %v1323 = vsel %vm1300, %v676, %v1322
        %v1324 = vsel %vm1302, %v685, %v1323
        %v1325 = vsel %vm1304, %v694, %v1324
        %v1326 = vsel %vm1306, %v703, %v1325
        %v1327 = vsel %vm1308, %v712, %v1326
        %v1328 = vsel %vm1310, %v721, %v1327
        %1329 = vrot.lane.b32.xlu0 %v1328, 4
        %v1330 = vpop.permute.xlu0 %1329
        %vm1332 = vcmask 64544
        %1333 = vst.msk [vmem:[#allocation2] sm:$0xff] %vm1332, %v1330
        %v1342 = vsel %vm1298, %v915, %v906
        %v1343 = vsel %vm1300, %v924, %v1342
        %v1344 = vsel %vm1302, %v933, %v1343
        %v1345 = vsel %vm1304, %v942, %v1344
        %v1346 = vsel %vm1306, %v951, %v1345
        %v1347 = vsel %vm1308, %v960, %v1346
        %v1348 = vsel %vm1310, %v969, %v1347
        %1349 = vrot.lane.b32.xlu0 %v1348, 8
        %v1350 = vpop.permute.xlu0 %1349
        %vm1352 = vcmask 97344
        %1353 = vst.msk [vmem:[#allocation2] sm:$0xff] %vm1352, %v1350
        %v1362 = vsel %vm1298, %v987, %v978
        %v1363 = vsel %vm1300, %v996, %v1362
        %v1364 = vsel %vm1302, %v1005, %v1363
        %v1365 = vsel %vm1304, %v1014, %v1364
        %v1366 = vsel %vm1306, %v1023, %v1365
        %v1367 = vsel %vm1308, %v1032, %v1366
        %v1368 = vsel %vm1310, %v1041, %v1367
        %1369 = vrot.lane.b32.xlu0 %v1368, 12
        %v1370 = vpop.permute.xlu0 %1369
        %vm1372 = vcmask 130144
        %1373 = vst.msk [vmem:[#allocation2] sm:$0xff] %vm1372, %v1370
        %v1382 = vsel %vm1298, %v1107, %v1098
        %v1383 = vsel %vm1300, %v1116, %v1382
        %v1384 = vsel %vm1302, %v1125, %v1383
        %v1385 = vsel %vm1304, %v1134, %v1384
        %v1386 = vsel %vm1306, %v1143, %v1385
        %v1387 = vsel %vm1308, %v1152, %v1386
        %v1388 = vsel %vm1310, %v1161, %v1387
        %1389 = vrot.lane.b32.xlu0 %v1388, 16
        %v1390 = vpop.permute.xlu0 %1389
        %vm1392 = vcmask 162944
        %1393 = vst.msk [vmem:[#allocation2] sm:$0xff] %vm1392, %v1390
        %v1402 = vsel %vm1298, %v1227, %v1218
        %v1403 = vsel %vm1300, %v1236, %v1402
        %v1404 = vsel %vm1302, %v1245, %v1403
        %v1405 = vsel %vm1304, %v1254, %v1404
        %v1406 = vsel %vm1306, %v1263, %v1405
        %v1407 = vsel %vm1308, %v1272, %v1406
        %v1408 = vsel %vm1310, %v1281, %v1407
        %1409 = vrot.lane.b32.xlu0 %v1408, 20
        %v1410 = vpop.permute.xlu0 %1409
        %vm1412 = vcmask 195744
        %1413 = vst.msk [vmem:[#allocation2] sm:$0xff] %vm1412, %v1410
        %v1414 = vld [vmem:[#allocation2] sm:$0xff]
        %v1415 = vpack.c.bf16 %v1414, %v1414
        %v1416 = vld [vmem:[%s1] sm:$0xf]
        %v1417 = vld [vmem:[%s1 + $0x4] sm:$0xf]
        %v1418 = vld [vmem:[%s1 + $0x8] sm:$0xf]
        %v1419 = vld [vmem:[%s2] sm:$0x1]
        %v1421 = vlaneseq
        %v1422 = vshrl.u32 %v1421, 7
        %v1423 = vsub.s32 0, %v1422
        %v1424 = vrot.slane %v1419, %v1423
        %v1429 = vunpack.c.l.b16 %v1416
        %v1430 = vunpack.c.l.b16 %v1417
        %v1431 = vunpack.c.l.b16 %v1418
        %v1432 = vpack.c.b16 %v1430, %v1429
        %v1433 = vpack.c.b16 %v1431, %v1431
        %vm1435 = vcmask 195584
        %v1437 = vsel %vm1435, %v1415, 0
        %vm1439 = vcmask 1043456
        %v1441 = vsel %vm1439, %v1433, 0
        %1443 = vmatprep.subr.bf16.mxu0 0
        %1444 = vmatpush1.bf16.msra.mxu0 %v1432
        %1445 = vmatprep.subr.bf16.mxu0 0
        %1446 = vmatpush1.bf16.msra.mxu0 %v1441
        %1447 = vmatprep.subr.bf16.mxu0 0
        %1448 = vmatpush1.bf16.msra.mxu0 0
        %1449 = vmatprep.subr.bf16.mxu0 0
        %1450 = vmatpush1.bf16.msra.mxu0 0
        %1451 = vmatprep.subr.bf16.mxu0 0
        %1452 = vmatpush1.bf16.msra.mxu0 0
        %1453 = vmatprep.subr.bf16.mxu0 0
        %1454 = vmatpush1.bf16.msra.mxu0 0
        %1455 = vmatprep.subr.bf16.mxu0 0
        %1456 = vmatpush1.bf16.msra.mxu0 0
        %1457 = vmatprep.subr.bf16.mxu0 0
        %1458 = vmatpush1.bf16.msra.mxu0 0
        %1459 = vmatprep.subr.bf16.mxu0 0
        %1460 = vmatpush1.bf16.msra.mxu0 0
        %1461 = vmatprep.subr.bf16.mxu0 0
        %1462 = vmatpush1.bf16.msra.mxu0 0
        %1463 = vmatprep.subr.bf16.mxu0 0
        %1464 = vmatpush1.bf16.msra.mxu0 0
        %1465 = vmatprep.subr.bf16.mxu0 0
        %1466 = vmatpush1.bf16.msra.mxu0 0
        %1467 = vmatprep.subr.bf16.mxu0 0
        %1468 = vmatpush1.bf16.msra.mxu0 0
        %1469 = vmatprep.subr.bf16.mxu0 0
        %1470 = vmatpush1.bf16.msra.mxu0 0
        %1471 = vmatprep.subr.bf16.mxu0 0
        %1472 = vmatpush1.bf16.msra.mxu0 0
        %1473 = vmatprep.subr.bf16.mxu0 0
        %1474 = vmatpush1.bf16.msra.mxu0 0
        %1475 = vmatprep.mubr.bf16.mxu0 0
        %1476 = vmatmul.mubr.bf16.gmra.mrb[0].mxu0 %v1437
        %v1477 = vpop.f32.mrb[0].mxu0
        %v1478 = vadd.f32 %v1424, %v1477
        %v1479 = vpop.f32.mrb[0].mxu0
        %v1480 = vpop.f32.mrb[0].mxu0
        %v1481 = vpop.f32.mrb[0].mxu0
        %1482 = vdwg.mxu0
        %1483 = vst [vmem:[%s265] sm:$0xff] %v1478
        %v1484 = vld [vmem:[%s278] sm:$0xff]
        %v1485 = vld [vmem:[%s278 + $0x8] sm:$0xff]
        %v1486 = vld [vmem:[%s278 + $0x10] sm:$0xff]
        %v1487 = vld [vmem:[%s278 + $0x18] sm:$0xff]
        %v1488 = vld [vmem:[%s278 + $0x20] sm:$0xff]
        %v1489 = vld [vmem:[%s278 + $0x28] sm:$0xff]
        %v1490 = vld [vmem:[%s278 + $0x30] sm:$0xff]
        %v1491 = vld [vmem:[%s278 + $0x38] sm:$0xff]
        %v1492 = vld [vmem:[%s278 + $0x40] sm:$0xff]
        %v1493 = vld [vmem:[%s278 + $0x48] sm:$0xff]
        %v1494 = vld [vmem:[%s278 + $0x50] sm:$0xff]
        %v1495 = vld [vmem:[%s278 + $0x58] sm:$0xff]
        %v1496 = vld [vmem:[%s278 + $0x60] sm:$0xff]
        %v1497 = vld [vmem:[%s278 + $0x68] sm:$0xff]
        %v1498 = vld [vmem:[%s278 + $0x70] sm:$0xff]
        %v1499 = vld [vmem:[%s278 + $0x78] sm:$0xff]
        %v1500 = vld [vmem:[%s278 + $0x80] sm:$0xff]
        %v1501 = vld [vmem:[%s278 + $0x88] sm:$0xff]
        %v1502 = vld [vmem:[%s278 + $0x90] sm:$0xff]
        %v1503 = vld [vmem:[%s278 + $0x98] sm:$0xff]
        %v1504 = vld [vmem:[%s278 + $0xa0] sm:$0xff]
        %v1505 = vld [vmem:[%s278 + $0xa8] sm:$0xff]
        %v1506 = vld [vmem:[%s278 + $0xb0] sm:$0xff]
        %v1507 = vld [vmem:[%s278 + $0xb8] sm:$0xff]
        %v1508 = vld [vmem:[%s278 + $0xc0] sm:$0xff]
        %v1509 = vld [vmem:[%s278 + $0xc8] sm:$0xff]
        %v1510 = vld [vmem:[%s278 + $0xd0] sm:$0xff]
        %v1511 = vld [vmem:[%s278 + $0xd8] sm:$0xff]
        %v1512 = vld [vmem:[%s278 + $0xe0] sm:$0xff]
        %v1513 = vld [vmem:[%s278 + $0xe8] sm:$0xff]
        %v1514 = vld [vmem:[%s278 + $0xf0] sm:$0xff]
        %v1515 = vld [vmem:[%s278 + $0xf8] sm:$0xff]
        %v1516 = vld [vmem:[%s278 + $0x100] sm:$0xff]
        %v1517 = vld [vmem:[%s278 + $0x108] sm:$0xff]
        %v1518 = vld [vmem:[%s278 + $0x110] sm:$0xff]
        %v1519 = vld [vmem:[%s278 + $0x118] sm:$0xff]
        %v1520 = vld [vmem:[%s278 + $0x120] sm:$0xff]
        %v1521 = vld [vmem:[%s278 + $0x128] sm:$0xff]
        %v1522 = vld [vmem:[%s278 + $0x130] sm:$0xff]
        %v1523 = vld [vmem:[%s278 + $0x138] sm:$0xff]
        %v1524 = vld [vmem:[%s278 + $0x140] sm:$0xff]
        %v1525 = vld [vmem:[%s278 + $0x148] sm:$0xff]
        %v1526 = vld [vmem:[%s278 + $0x150] sm:$0xff]
        %v1527 = vld [vmem:[%s278 + $0x158] sm:$0xff]
        %v1528 = vld [vmem:[%s278 + $0x160] sm:$0xff]
        %v1529 = vld [vmem:[%s278 + $0x168] sm:$0xff]
        %v1530 = vld [vmem:[%s278 + $0x170] sm:$0xff]
        %v1531 = vld [vmem:[%s278 + $0x178] sm:$0xff]
        %v1532 = vld [vmem:[%s278 + $0x180] sm:$0xff]
        %v1533 = vld [vmem:[%s278 + $0x188] sm:$0xff]
        %v1534 = vld [vmem:[%s278 + $0x190] sm:$0xff]
        %v1535 = vld [vmem:[%s278 + $0x198] sm:$0xff]
        %v1536 = vld [vmem:[%s278 + $0x1a0] sm:$0xff]
        %v1537 = vld [vmem:[%s278 + $0x1a8] sm:$0xff]
        %v1538 = vld [vmem:[%s278 + $0x1b0] sm:$0xff]
        %v1539 = vld [vmem:[%s278 + $0x1b8] sm:$0xff]
        %v1540 = vld [vmem:[%s278 + $0x1c0] sm:$0xff]
        %v1541 = vld [vmem:[%s278 + $0x1c8] sm:$0xff]
        %v1542 = vld [vmem:[%s278 + $0x1d0] sm:$0xff]
        %v1543 = vld [vmem:[%s278 + $0x1d8] sm:$0xff]
        %v1544 = vld [vmem:[%s278 + $0x1e0] sm:$0xff]
        %v1545 = vld [vmem:[%s278 + $0x1e8] sm:$0xff]
        %v1546 = vld [vmem:[%s278 + $0x1f0] sm:$0xff]
        %v1547 = vld [vmem:[%s278 + $0x1f8] sm:$0xff]
        %v1548 = vld [vmem:[%s278 + $0x200] sm:$0xff]
        %v1549 = vld [vmem:[%s278 + $0x208] sm:$0xff]
        %v1550 = vld [vmem:[%s278 + $0x210] sm:$0xff]
        %v1551 = vld [vmem:[%s278 + $0x218] sm:$0xff]
        %v1552 = vld [vmem:[%s278 + $0x220] sm:$0xff]
        %v1553 = vld [vmem:[%s278 + $0x228] sm:$0xff]
        %v1554 = vld [vmem:[%s278 + $0x230] sm:$0xff]
        %v1555 = vld [vmem:[%s278 + $0x238] sm:$0xff]
        %v1556 = vld [vmem:[%s278 + $0x240] sm:$0xff]
        %v1557 = vld [vmem:[%s278 + $0x248] sm:$0xff]
        %v1558 = vld [vmem:[%s278 + $0x250] sm:$0xff]
        %v1559 = vld [vmem:[%s278 + $0x258] sm:$0xff]
        %v1560 = vld [vmem:[%s278 + $0x260] sm:$0xff]
        %v1561 = vld [vmem:[%s278 + $0x268] sm:$0xff]
        %v1562 = vld [vmem:[%s278 + $0x270] sm:$0xff]
        %v1563 = vld [vmem:[%s278 + $0x278] sm:$0xff]
        %v1564 = vld [vmem:[%s278 + $0x280] sm:$0xff]
        %v1565 = vld [vmem:[%s278 + $0x288] sm:$0xff]
        %v1566 = vld [vmem:[%s278 + $0x290] sm:$0xff]
        %v1567 = vld [vmem:[%s278 + $0x298] sm:$0xff]
        %v1568 = vld [vmem:[%s278 + $0x2a0] sm:$0xff]
        %v1569 = vld [vmem:[%s278 + $0x2a8] sm:$0xff]
        %v1570 = vld [vmem:[%s278 + $0x2b0] sm:$0xff]
        %v1571 = vld [vmem:[%s278 + $0x2b8] sm:$0xff]
        %v1572 = vld [vmem:[%s278 + $0x2c0] sm:$0xff]
        %v1573 = vld [vmem:[%s278 + $0x2c8] sm:$0xff]
        %v1574 = vld [vmem:[%s278 + $0x2d0] sm:$0xff]
        %v1575 = vld [vmem:[%s278 + $0x2d8] sm:$0xff]
        %v1576 = vld [vmem:[%s278 + $0x2e0] sm:$0xff]
        %v1577 = vld [vmem:[%s278 + $0x2e8] sm:$0xff]
        %v1578 = vld [vmem:[%s278 + $0x2f0] sm:$0xff]
        %v1579 = vld [vmem:[%s278 + $0x2f8] sm:$0xff]
        %v1580 = vld [vmem:[%s278 + $0x300] sm:$0xff]
        %v1581 = vld [vmem:[%s278 + $0x308] sm:$0xff]
        %v1582 = vld [vmem:[%s278 + $0x310] sm:$0xff]
        %v1583 = vld [vmem:[%s278 + $0x318] sm:$0xff]
        %v1584 = vld [vmem:[%s278 + $0x320] sm:$0xff]
        %v1585 = vld [vmem:[%s278 + $0x328] sm:$0xff]
        %v1586 = vld [vmem:[%s278 + $0x330] sm:$0xff]
        %v1587 = vld [vmem:[%s278 + $0x338] sm:$0xff]
        %v1588 = vld [vmem:[%s278 + $0x340] sm:$0xff]
        %v1589 = vld [vmem:[%s278 + $0x348] sm:$0xff]
        %v1590 = vld [vmem:[%s278 + $0x350] sm:$0xff]
        %v1591 = vld [vmem:[%s278 + $0x358] sm:$0xff]
        %v1592 = vld [vmem:[%s278 + $0x360] sm:$0xff]
        %v1593 = vld [vmem:[%s278 + $0x368] sm:$0xff]
        %v1594 = vld [vmem:[%s278 + $0x370] sm:$0xff]
        %v1595 = vld [vmem:[%s278 + $0x378] sm:$0xff]
        %v1596 = vld [vmem:[%s278 + $0x380] sm:$0xff]
        %v1597 = vld [vmem:[%s278 + $0x388] sm:$0xff]
        %v1598 = vld [vmem:[%s278 + $0x390] sm:$0xff]
        %v1599 = vld [vmem:[%s278 + $0x398] sm:$0xff]
        %v1600 = vld [vmem:[%s278 + $0x3a0] sm:$0xff]
        %v1601 = vld [vmem:[%s278 + $0x3a8] sm:$0xff]
        %v1602 = vld [vmem:[%s278 + $0x3b0] sm:$0xff]
        %v1603 = vld [vmem:[%s278 + $0x3b8] sm:$0xff]
        %v1604 = vld [vmem:[%s278 + $0x3c0] sm:$0xff]
        %v1605 = vld [vmem:[%s278 + $0x3c8] sm:$0xff]
        %v1606 = vld [vmem:[%s278 + $0x3d0] sm:$0xff]
        %v1607 = vld [vmem:[%s278 + $0x3d8] sm:$0xff]
        %v1608 = vld [vmem:[%s278 + $0x3e0] sm:$0xff]
        %v1609 = vld [vmem:[%s278 + $0x3e8] sm:$0xff]
        %v1610 = vld [vmem:[%s278 + $0x3f0] sm:$0xff]
        %v1611 = vld [vmem:[%s278 + $0x3f8] sm:$0xff]
        %v1612 = vld [vmem:[%s278 + $0x400] sm:$0xff]
        %v1613 = vld [vmem:[%s278 + $0x408] sm:$0xff]
        %v1614 = vld [vmem:[%s278 + $0x410] sm:$0xff]
        %v1615 = vld [vmem:[%s278 + $0x418] sm:$0xff]
        %v1616 = vld [vmem:[%s278 + $0x420] sm:$0xff]
        %v1617 = vld [vmem:[%s278 + $0x428] sm:$0xff]
        %v1618 = vld [vmem:[%s278 + $0x430] sm:$0xff]
        %v1619 = vld [vmem:[%s278 + $0x438] sm:$0xff]
        %v1620 = vld [vmem:[%s278 + $0x440] sm:$0xff]
        %v1621 = vld [vmem:[%s278 + $0x448] sm:$0xff]
        %v1622 = vld [vmem:[%s278 + $0x450] sm:$0xff]
        %v1623 = vld [vmem:[%s278 + $0x458] sm:$0xff]
        %v1624 = vld [vmem:[%s278 + $0x460] sm:$0xff]
        %v1625 = vld [vmem:[%s278 + $0x468] sm:$0xff]
        %v1626 = vld [vmem:[%s278 + $0x470] sm:$0xff]
        %v1627 = vld [vmem:[%s278 + $0x478] sm:$0xff]
        %v1628 = vld [vmem:[%s278 + $0x480] sm:$0xff]
        %v1629 = vld [vmem:[%s278 + $0x488] sm:$0xff]
        %v1630 = vld [vmem:[%s278 + $0x490] sm:$0xff]
        %v1631 = vld [vmem:[%s278 + $0x498] sm:$0xff]
        %v1632 = vld [vmem:[%s278 + $0x4a0] sm:$0xff]
        %v1633 = vld [vmem:[%s278 + $0x4a8] sm:$0xff]
        %v1634 = vld [vmem:[%s278 + $0x4b0] sm:$0xff]
        %v1635 = vld [vmem:[%s278 + $0x4b8] sm:$0xff]
        %v1636 = vld [vmem:[%s278 + $0x4c0] sm:$0xff]
        %v1637 = vld [vmem:[%s278 + $0x4c8] sm:$0xff]
        %v1638 = vld [vmem:[%s278 + $0x4d0] sm:$0xff]
        %v1639 = vld [vmem:[%s278 + $0x4d8] sm:$0xff]
        %v1640 = vld [vmem:[%s278 + $0x4e0] sm:$0xff]
        %v1641 = vld [vmem:[%s278 + $0x4e8] sm:$0xff]
        %v1642 = vld [vmem:[%s278 + $0x4f0] sm:$0xff]
        %v1643 = vld [vmem:[%s278 + $0x4f8] sm:$0xff]
        %v1644 = vld [vmem:[%s278 + $0x500] sm:$0xff]
        %v1645 = vld [vmem:[%s278 + $0x508] sm:$0xff]
        %v1646 = vld [vmem:[%s278 + $0x510] sm:$0xff]
        %v1647 = vld [vmem:[%s278 + $0x518] sm:$0xff]
        %v1648 = vld [vmem:[%s278 + $0x520] sm:$0xff]
        %v1649 = vld [vmem:[%s278 + $0x528] sm:$0xff]
        %v1650 = vld [vmem:[%s278 + $0x530] sm:$0xff]
        %v1651 = vld [vmem:[%s278 + $0x538] sm:$0xff]
        %v1652 = vld [vmem:[%s278 + $0x540] sm:$0xff]
        %v1653 = vld [vmem:[%s278 + $0x548] sm:$0xff]
        %v1654 = vld [vmem:[%s278 + $0x550] sm:$0xff]
        %v1655 = vld [vmem:[%s278 + $0x558] sm:$0xff]
        %v1656 = vld [vmem:[%s278 + $0x560] sm:$0xff]
        %v1657 = vld [vmem:[%s278 + $0x568] sm:$0xff]
        %v1658 = vld [vmem:[%s278 + $0x570] sm:$0xff]
        %v1659 = vld [vmem:[%s278 + $0x578] sm:$0xff]
        %v1660 = vld [vmem:[%s278 + $0x580] sm:$0xff]
        %v1661 = vld [vmem:[%s278 + $0x588] sm:$0xff]
        %v1662 = vld [vmem:[%s278 + $0x590] sm:$0xff]
        %v1663 = vld [vmem:[%s278 + $0x598] sm:$0xff]
        %v1664 = vld [vmem:[%s278 + $0x5a0] sm:$0xff]
        %v1665 = vld [vmem:[%s278 + $0x5a8] sm:$0xff]
        %v1666 = vld [vmem:[%s278 + $0x5b0] sm:$0xff]
        %v1667 = vld [vmem:[%s278 + $0x5b8] sm:$0xff]
        %v1668 = vld [vmem:[%s278 + $0x5c0] sm:$0xff]
        %v1669 = vld [vmem:[%s278 + $0x5c8] sm:$0xff]
        %v1670 = vld [vmem:[%s278 + $0x5d0] sm:$0xff]
        %v1671 = vld [vmem:[%s278 + $0x5d8] sm:$0xff]
        %v1672 = vld [vmem:[%s278 + $0x5e0] sm:$0xff]
        %v1673 = vld [vmem:[%s278 + $0x5e8] sm:$0xff]
        %v1674 = vld [vmem:[%s278 + $0x5f0] sm:$0xff]
        %v1675 = vld [vmem:[%s278 + $0x5f8] sm:$0xff]
        %vm1676 = vcmask 64512
        %v1677 = vsel %vm1676, %v1484, -inf
        %v1678 = vsel %vm1676, %v1486, -inf
        %v1679 = vmax.f32 %v1677, %v1678
        %v1680 = vsel %vm1676, %v1488, -inf
        %v1681 = vmax.f32 %v1679, %v1680
        %v1682 = vsel %vm1676, %v1490, -inf
        %v1683 = vmax.f32 %v1681, %v1682
        %v1684 = vsel %vm1676, %v1492, -inf
        %v1685 = vmax.f32 %v1683, %v1684
        %v1686 = vsel %vm1676, %v1494, -inf
        %v1687 = vmax.f32 %v1685, %v1686
        %v1688 = vsel %vm1676, %v1485, -inf
        %v1689 = vsel %vm1676, %v1487, -inf
        %v1690 = vmax.f32 %v1688, %v1689
        %v1691 = vsel %vm1676, %v1489, -inf
        %v1692 = vmax.f32 %v1690, %v1691
        %v1693 = vsel %vm1676, %v1491, -inf
        %v1694 = vmax.f32 %v1692, %v1693
        %v1695 = vsel %vm1676, %v1493, -inf
        %v1696 = vmax.f32 %v1694, %v1695
        %v1697 = vsel %vm1676, %v1495, -inf
        %v1698 = vmax.f32 %v1696, %v1697
        %v1699 = vsel %vm1676, %v1508, -inf
        %v1700 = vsel %vm1676, %v1510, -inf
        %v1701 = vmax.f32 %v1699, %v1700
        %v1702 = vsel %vm1676, %v1512, -inf
        %v1703 = vmax.f32 %v1701, %v1702
        %v1704 = vsel %vm1676, %v1514, -inf
        %v1705 = vmax.f32 %v1703, %v1704
        %v1706 = vsel %vm1676, %v1516, -inf
        %v1707 = vmax.f32 %v1705, %v1706
        %v1708 = vsel %vm1676, %v1518, -inf
        %v1709 = vmax.f32 %v1707, %v1708
        %v1710 = vsel %vm1676, %v1509, -inf
        %v1711 = vsel %vm1676, %v1511, -inf
        %v1712 = vmax.f32 %v1710, %v1711
        %v1713 = vsel %vm1676, %v1513, -inf
        %v1714 = vmax.f32 %v1712, %v1713
        %v1715 = vsel %vm1676, %v1515, -inf
        %v1716 = vmax.f32 %v1714, %v1715
        %v1717 = vsel %vm1676, %v1517, -inf
        %v1718 = vmax.f32 %v1716, %v1717
        %v1719 = vsel %vm1676, %v1519, -inf
        %v1720 = vmax.f32 %v1718, %v1719
        %v1721 = vsel %vm1676, %v1532, -inf
        %v1722 = vsel %vm1676, %v1534, -inf
        %v1723 = vmax.f32 %v1721, %v1722
        %v1724 = vsel %vm1676, %v1536, -inf
        %v1725 = vmax.f32 %v1723, %v1724
        %v1726 = vsel %vm1676, %v1538, -inf
        %v1727 = vmax.f32 %v1725, %v1726
        %v1728 = vsel %vm1676, %v1540, -inf
        %v1729 = vmax.f32 %v1727, %v1728
        %v1730 = vsel %vm1676, %v1542, -inf
        %v1731 = vmax.f32 %v1729, %v1730
        %v1732 = vsel %vm1676, %v1533, -inf
        %v1733 = vsel %vm1676, %v1535, -inf
        %v1734 = vmax.f32 %v1732, %v1733
        %v1735 = vsel %vm1676, %v1537, -inf
        %v1736 = vmax.f32 %v1734, %v1735
        %v1737 = vsel %vm1676, %v1539, -inf
        %v1738 = vmax.f32 %v1736, %v1737
        %v1739 = vsel %vm1676, %v1541, -inf
        %v1740 = vmax.f32 %v1738, %v1739
        %v1741 = vsel %vm1676, %v1543, -inf
        %v1742 = vmax.f32 %v1740, %v1741
        %v1743 = vsel %vm1676, %v1556, -inf
        %v1744 = vsel %vm1676, %v1558, -inf
        %v1745 = vmax.f32 %v1743, %v1744
        %v1746 = vsel %vm1676, %v1560, -inf
        %v1747 = vmax.f32 %v1745, %v1746
        %v1748 = vsel %vm1676, %v1562, -inf
        %v1749 = vmax.f32 %v1747, %v1748
        %v1750 = vsel %vm1676, %v1564, -inf
        %v1751 = vmax.f32 %v1749, %v1750
        %v1752 = vsel %vm1676, %v1566, -inf
        %v1753 = vmax.f32 %v1751, %v1752
        %v1754 = vsel %vm1676, %v1557, -inf
        %v1755 = vsel %vm1676, %v1559, -inf
        %v1756 = vmax.f32 %v1754, %v1755
        %v1757 = vsel %vm1676, %v1561, -inf
        %v1758 = vmax.f32 %v1756, %v1757
        %v1759 = vsel %vm1676, %v1563, -inf
        %v1760 = vmax.f32 %v1758, %v1759
        %v1761 = vsel %vm1676, %v1565, -inf
        %v1762 = vmax.f32 %v1760, %v1761
        %v1763 = vsel %vm1676, %v1567, -inf
        %v1764 = vmax.f32 %v1762, %v1763
        %v1765 = vsel %vm1676, %v1580, -inf
        %v1766 = vsel %vm1676, %v1582, -inf
        %v1767 = vmax.f32 %v1765, %v1766
        %v1768 = vsel %vm1676, %v1584, -inf
        %v1769 = vmax.f32 %v1767, %v1768
        %v1770 = vsel %vm1676, %v1586, -inf
        %v1771 = vmax.f32 %v1769, %v1770
        %v1772 = vsel %vm1676, %v1588, -inf
        %v1773 = vmax.f32 %v1771, %v1772
        %v1774 = vsel %vm1676, %v1590, -inf
        %v1775 = vmax.f32 %v1773, %v1774
        %v1776 = vsel %vm1676, %v1581, -inf
        %v1777 = vsel %vm1676, %v1583, -inf
        %v1778 = vmax.f32 %v1776, %v1777
        %v1779 = vsel %vm1676, %v1585, -inf
        %v1780 = vmax.f32 %v1778, %v1779
        %v1781 = vsel %vm1676, %v1587, -inf
        %v1782 = vmax.f32 %v1780, %v1781
        %v1783 = vsel %vm1676, %v1589, -inf
        %v1784 = vmax.f32 %v1782, %v1783
        %v1785 = vsel %vm1676, %v1591, -inf
        %v1786 = vmax.f32 %v1784, %v1785
        %v1787 = vsel %vm1676, %v1604, -inf
        %v1788 = vsel %vm1676, %v1606, -inf
        %v1789 = vmax.f32 %v1787, %v1788
        %v1790 = vsel %vm1676, %v1608, -inf
        %v1791 = vmax.f32 %v1789, %v1790
        %v1792 = vsel %vm1676, %v1610, -inf
        %v1793 = vmax.f32 %v1791, %v1792
        %v1794 = vsel %vm1676, %v1612, -inf
        %v1795 = vmax.f32 %v1793, %v1794
        %v1796 = vsel %vm1676, %v1614, -inf
        %v1797 = vmax.f32 %v1795, %v1796
        %v1798 = vsel %vm1676, %v1605, -inf
        %v1799 = vsel %vm1676, %v1607, -inf
        %v1800 = vmax.f32 %v1798, %v1799
        %v1801 = vsel %vm1676, %v1609, -inf
        %v1802 = vmax.f32 %v1800, %v1801
        %v1803 = vsel %vm1676, %v1611, -inf
        %v1804 = vmax.f32 %v1802, %v1803
        %v1805 = vsel %vm1676, %v1613, -inf
        %v1806 = vmax.f32 %v1804, %v1805
        %v1807 = vsel %vm1676, %v1615, -inf
        %v1808 = vmax.f32 %v1806, %v1807
        %v1809 = vsel %vm1676, %v1628, -inf
        %v1810 = vsel %vm1676, %v1630, -inf
        %v1811 = vmax.f32 %v1809, %v1810
        %v1812 = vsel %vm1676, %v1632, -inf
        %v1813 = vmax.f32 %v1811, %v1812
        %v1814 = vsel %vm1676, %v1634, -inf
        %v1815 = vmax.f32 %v1813, %v1814
        %v1816 = vsel %vm1676, %v1636, -inf
        %v1817 = vmax.f32 %v1815, %v1816
        %v1818 = vsel %vm1676, %v1638, -inf
        %v1819 = vmax.f32 %v1817, %v1818
        %v1820 = vsel %vm1676, %v1629, -inf
        %v1821 = vsel %vm1676, %v1631, -inf
        %v1822 = vmax.f32 %v1820, %v1821
        %v1823 = vsel %vm1676, %v1633, -inf
        %v1824 = vmax.f32 %v1822, %v1823
        %v1825 = vsel %vm1676, %v1635, -inf
        %v1826 = vmax.f32 %v1824, %v1825
        %v1827 = vsel %vm1676, %v1637, -inf
        %v1828 = vmax.f32 %v1826, %v1827
        %v1829 = vsel %vm1676, %v1639, -inf
        %v1830 = vmax.f32 %v1828, %v1829
        %v1831 = vsel %vm1676, %v1652, -inf
        %v1832 = vsel %vm1676, %v1654, -inf
        %v1833 = vmax.f32 %v1831, %v1832
        %v1834 = vsel %vm1676, %v1656, -inf
        %v1835 = vmax.f32 %v1833, %v1834
        %v1836 = vsel %vm1676, %v1658, -inf
        %v1837 = vmax.f32 %v1835, %v1836
        %v1838 = vsel %vm1676, %v1660, -inf
        %v1839 = vmax.f32 %v1837, %v1838
        %v1840 = vsel %vm1676, %v1662, -inf
        %v1841 = vmax.f32 %v1839, %v1840
        %v1842 = vsel %vm1676, %v1653, -inf
        %v1843 = vsel %vm1676, %v1655, -inf
        %v1844 = vmax.f32 %v1842, %v1843
        %v1845 = vsel %vm1676, %v1657, -inf
        %v1846 = vmax.f32 %v1844, %v1845
        %v1847 = vsel %vm1676, %v1659, -inf
        %v1848 = vmax.f32 %v1846, %v1847
        %v1849 = vsel %vm1676, %v1661, -inf
        %v1850 = vmax.f32 %v1848, %v1849
        %v1851 = vsel %vm1676, %v1663, -inf
        %v1852 = vmax.f32 %v1850, %v1851
        %v1853 = vsel %vm1676, %v1687, -inf
        %v1854 = vsel %vm1676, %v1698, -inf
        %v1855 = vmax.f32 %v1853, %v1854
        %v1856 = vrot.slane %v1855, 4
        %v1857 = vmax.f32 %v1855, %v1856
        %v1858 = vrot.slane %v1857, 2
        %v1859 = vmax.f32 %v1857, %v1858
        %v1860 = vrot.slane %v1859, 1
        %v1861 = vmax.f32 %v1859, %v1860
        %v1862 = vsel %vm1676, %v1709, -inf
        %v1863 = vsel %vm1676, %v1720, -inf
        %v1864 = vmax.f32 %v1862, %v1863
        %v1865 = vrot.slane %v1864, 4
        %v1866 = vmax.f32 %v1864, %v1865
        %v1867 = vrot.slane %v1866, 2
        %v1868 = vmax.f32 %v1866, %v1867
        %v1869 = vrot.slane %v1868, 1
        %v1870 = vmax.f32 %v1868, %v1869
        %v1871 = vsel %vm1676, %v1731, -inf
        %v1872 = vsel %vm1676, %v1742, -inf
        %v1873 = vmax.f32 %v1871, %v1872
        %v1874 = vrot.slane %v1873, 4
        %v1875 = vmax.f32 %v1873, %v1874
        %v1876 = vrot.slane %v1875, 2
        %v1877 = vmax.f32 %v1875, %v1876
        %v1878 = vrot.slane %v1877, 1
        %v1879 = vmax.f32 %v1877, %v1878
        %v1880 = vsel %vm1676, %v1753, -inf
        %v1881 = vsel %vm1676, %v1764, -inf
        %v1882 = vmax.f32 %v1880, %v1881
        %v1883 = vrot.slane %v1882, 4
        %v1884 = vmax.f32 %v1882, %v1883
        %v1885 = vrot.slane %v1884, 2
        %v1886 = vmax.f32 %v1884, %v1885
        %v1887 = vrot.slane %v1886, 1
        %v1888 = vmax.f32 %v1886, %v1887
        %v1889 = vsel %vm1676, %v1775, -inf
        %v1890 = vsel %vm1676, %v1786, -inf
        %v1891 = vmax.f32 %v1889, %v1890
        %v1892 = vrot.slane %v1891, 4
        %v1893 = vmax.f32 %v1891, %v1892
        %v1894 = vrot.slane %v1893, 2
        %v1895 = vmax.f32 %v1893, %v1894
        %v1896 = vrot.slane %v1895, 1
        %v1897 = vmax.f32 %v1895, %v1896
        %v1898 = vsel %vm1676, %v1797, -inf
        %v1899 = vsel %vm1676, %v1808, -inf
        %v1900 = vmax.f32 %v1898, %v1899
        %v1901 = vrot.slane %v1900, 4
        %v1902 = vmax.f32 %v1900, %v1901
        %v1903 = vrot.slane %v1902, 2
        %v1904 = vmax.f32 %v1902, %v1903
        %v1905 = vrot.slane %v1904, 1
        %v1906 = vmax.f32 %v1904, %v1905
        %v1907 = vsel %vm1676, %v1819, -inf
        %v1908 = vsel %vm1676, %v1830, -inf
        %v1909 = vmax.f32 %v1907, %v1908
        %v1910 = vrot.slane %v1909, 4
        %v1911 = vmax.f32 %v1909, %v1910
        %v1912 = vrot.slane %v1911, 2
        %v1913 = vmax.f32 %v1911, %v1912
        %v1914 = vrot.slane %v1913, 1
        %v1915 = vmax.f32 %v1913, %v1914
        %v1916 = vsel %vm1676, %v1841, -inf
        %v1917 = vsel %vm1676, %v1852, -inf
        %v1918 = vmax.f32 %v1916, %v1917
        %v1919 = vrot.slane %v1918, 4
        %v1920 = vmax.f32 %v1918, %v1919
        %v1921 = vrot.slane %v1920, 2
        %v1922 = vmax.f32 %v1920, %v1921
        %v1923 = vrot.slane %v1922, 1
        %v1924 = vmax.f32 %v1922, %v1923
        %v1925 = vsel %vm1676, %v1496, -inf
        %v1926 = vsel %vm1676, %v1498, -inf
        %v1927 = vmax.f32 %v1925, %v1926
        %v1928 = vsel %vm1676, %v1500, -inf
        %v1929 = vmax.f32 %v1927, %v1928
        %v1930 = vsel %vm1676, %v1502, -inf
        %v1931 = vmax.f32 %v1929, %v1930
        %v1932 = vsel %vm1676, %v1504, -inf
        %v1933 = vmax.f32 %v1931, %v1932
        %v1934 = vsel %vm1676, %v1506, -inf
        %v1935 = vmax.f32 %v1933, %v1934
        %v1936 = vsel %vm1676, %v1497, -inf
        %v1937 = vsel %vm1676, %v1499, -inf
        %v1938 = vmax.f32 %v1936, %v1937
        %v1939 = vsel %vm1676, %v1501, -inf
        %v1940 = vmax.f32 %v1938, %v1939
        %v1941 = vsel %vm1676, %v1503, -inf
        %v1942 = vmax.f32 %v1940, %v1941
        %v1943 = vsel %vm1676, %v1505, -inf
        %v1944 = vmax.f32 %v1942, %v1943
        %v1945 = vsel %vm1676, %v1507, -inf
        %v1946 = vmax.f32 %v1944, %v1945
        %v1947 = vsel %vm1676, %v1520, -inf
        %v1948 = vsel %vm1676, %v1522, -inf
        %v1949 = vmax.f32 %v1947, %v1948
        %v1950 = vsel %vm1676, %v1524, -inf
        %v1951 = vmax.f32 %v1949, %v1950
        %v1952 = vsel %vm1676, %v1526, -inf
        %v1953 = vmax.f32 %v1951, %v1952
        %v1954 = vsel %vm1676, %v1528, -inf
        %v1955 = vmax.f32 %v1953, %v1954
        %v1956 = vsel %vm1676, %v1530, -inf
        %v1957 = vmax.f32 %v1955, %v1956
        %v1958 = vsel %vm1676, %v1521, -inf
        %v1959 = vsel %vm1676, %v1523, -inf
        %v1960 = vmax.f32 %v1958, %v1959
        %v1961 = vsel %vm1676, %v1525, -inf
        %v1962 = vmax.f32 %v1960, %v1961
        %v1963 = vsel %vm1676, %v1527, -inf
        %v1964 = vmax.f32 %v1962, %v1963
        %v1965 = vsel %vm1676, %v1529, -inf
        %v1966 = vmax.f32 %v1964, %v1965
        %v1967 = vsel %vm1676, %v1531, -inf
        %v1968 = vmax.f32 %v1966, %v1967
        %v1969 = vsel %vm1676, %v1544, -inf
        %v1970 = vsel %vm1676, %v1546, -inf
        %v1971 = vmax.f32 %v1969, %v1970
        %v1972 = vsel %vm1676, %v1548, -inf
        %v1973 = vmax.f32 %v1971, %v1972
        %v1974 = vsel %vm1676, %v1550, -inf
        %v1975 = vmax.f32 %v1973, %v1974
        %v1976 = vsel %vm1676, %v1552, -inf
        %v1977 = vmax.f32 %v1975, %v1976
        %v1978 = vsel %vm1676, %v1554, -inf
        %v1979 = vmax.f32 %v1977, %v1978
        %v1980 = vsel %vm1676, %v1545, -inf
        %v1981 = vsel %vm1676, %v1547, -inf
        %v1982 = vmax.f32 %v1980, %v1981
        %v1983 = vsel %vm1676, %v1549, -inf
        %v1984 = vmax.f32 %v1982, %v1983
        %v1985 = vsel %vm1676, %v1551, -inf
        %v1986 = vmax.f32 %v1984, %v1985
        %v1987 = vsel %vm1676, %v1553, -inf
        %v1988 = vmax.f32 %v1986, %v1987
        %v1989 = vsel %vm1676, %v1555, -inf
        %v1990 = vmax.f32 %v1988, %v1989
        %v1991 = vsel %vm1676, %v1568, -inf
        %v1992 = vsel %vm1676, %v1570, -inf
        %v1993 = vmax.f32 %v1991, %v1992
        %v1994 = vsel %vm1676, %v1572, -inf
        %v1995 = vmax.f32 %v1993, %v1994
        %v1996 = vsel %vm1676, %v1574, -inf
        %v1997 = vmax.f32 %v1995, %v1996
        %v1998 = vsel %vm1676, %v1576, -inf
        %v1999 = vmax.f32 %v1997, %v1998
        %v2000 = vsel %vm1676, %v1578, -inf
        %v2001 = vmax.f32 %v1999, %v2000
        %v2002 = vsel %vm1676, %v1569, -inf
        %v2003 = vsel %vm1676, %v1571, -inf
        %v2004 = vmax.f32 %v2002, %v2003
        %v2005 = vsel %vm1676, %v1573, -inf
        %v2006 = vmax.f32 %v2004, %v2005
        %v2007 = vsel %vm1676, %v1575, -inf
        %v2008 = vmax.f32 %v2006, %v2007
        %v2009 = vsel %vm1676, %v1577, -inf
        %v2010 = vmax.f32 %v2008, %v2009
        %v2011 = vsel %vm1676, %v1579, -inf
        %v2012 = vmax.f32 %v2010, %v2011
        %v2013 = vsel %vm1676, %v1592, -inf
        %v2014 = vsel %vm1676, %v1594, -inf
        %v2015 = vmax.f32 %v2013, %v2014
        %v2016 = vsel %vm1676, %v1596, -inf
        %v2017 = vmax.f32 %v2015, %v2016
        %v2018 = vsel %vm1676, %v1598, -inf
        %v2019 = vmax.f32 %v2017, %v2018
        %v2020 = vsel %vm1676, %v1600, -inf
        %v2021 = vmax.f32 %v2019, %v2020
        %v2022 = vsel %vm1676, %v1602, -inf
        %v2023 = vmax.f32 %v2021, %v2022
        %v2024 = vsel %vm1676, %v1593, -inf
        %v2025 = vsel %vm1676, %v1595, -inf
        %v2026 = vmax.f32 %v2024, %v2025
        %v2027 = vsel %vm1676, %v1597, -inf
        %v2028 = vmax.f32 %v2026, %v2027
        %v2029 = vsel %vm1676, %v1599, -inf
        %v2030 = vmax.f32 %v2028, %v2029
        %v2031 = vsel %vm1676, %v1601, -inf
        %v2032 = vmax.f32 %v2030, %v2031
        %v2033 = vsel %vm1676, %v1603, -inf
        %v2034 = vmax.f32 %v2032, %v2033
        %v2035 = vsel %vm1676, %v1616, -inf
        %v2036 = vsel %vm1676, %v1618, -inf
        %v2037 = vmax.f32 %v2035, %v2036
        %v2038 = vsel %vm1676, %v1620, -inf
        %v2039 = vmax.f32 %v2037, %v2038
        %v2040 = vsel %vm1676, %v1622, -inf
        %v2041 = vmax.f32 %v2039, %v2040
        %v2042 = vsel %vm1676, %v1624, -inf
        %v2043 = vmax.f32 %v2041, %v2042
        %v2044 = vsel %vm1676, %v1626, -inf
        %v2045 = vmax.f32 %v2043, %v2044
        %v2046 = vsel %vm1676, %v1617, -inf
        %v2047 = vsel %vm1676, %v1619, -inf
        %v2048 = vmax.f32 %v2046, %v2047
        %v2049 = vsel %vm1676, %v1621, -inf
        %v2050 = vmax.f32 %v2048, %v2049
        %v2051 = vsel %vm1676, %v1623, -inf
        %v2052 = vmax.f32 %v2050, %v2051
        %v2053 = vsel %vm1676, %v1625, -inf
        %v2054 = vmax.f32 %v2052, %v2053
        %v2055 = vsel %vm1676, %v1627, -inf
        %v2056 = vmax.f32 %v2054, %v2055
        %v2057 = vsel %vm1676, %v1640, -inf
        %v2058 = vsel %vm1676, %v1642, -inf
        %v2059 = vmax.f32 %v2057, %v2058
        %v2060 = vsel %vm1676, %v1644, -inf
        %v2061 = vmax.f32 %v2059, %v2060
        %v2062 = vsel %vm1676, %v1646, -inf
        %v2063 = vmax.f32 %v2061, %v2062
        %v2064 = vsel %vm1676, %v1648, -inf
        %v2065 = vmax.f32 %v2063, %v2064
        %v2066 = vsel %vm1676, %v1650, -inf
        %v2067 = vmax.f32 %v2065, %v2066
        %v2068 = vsel %vm1676, %v1641, -inf
        %v2069 = vsel %vm1676, %v1643, -inf
        %v2070 = vmax.f32 %v2068, %v2069
        %v2071 = vsel %vm1676, %v1645, -inf
        %v2072 = vmax.f32 %v2070, %v2071
        %v2073 = vsel %vm1676, %v1647, -inf
        %v2074 = vmax.f32 %v2072, %v2073
        %v2075 = vsel %vm1676, %v1649, -inf
        %v2076 = vmax.f32 %v2074, %v2075
        %v2077 = vsel %vm1676, %v1651, -inf
        %v2078 = vmax.f32 %v2076, %v2077
        %v2079 = vsel %vm1676, %v1664, -inf
        %v2080 = vsel %vm1676, %v1666, -inf
        %v2081 = vmax.f32 %v2079, %v2080
        %v2082 = vsel %vm1676, %v1668, -inf
        %v2083 = vmax.f32 %v2081, %v2082
        %v2084 = vsel %vm1676, %v1670, -inf
        %v2085 = vmax.f32 %v2083, %v2084
        %v2086 = vsel %vm1676, %v1672, -inf
        %v2087 = vmax.f32 %v2085, %v2086
        %v2088 = vsel %vm1676, %v1674, -inf
        %v2089 = vmax.f32 %v2087, %v2088
        %v2090 = vsel %vm1676, %v1665, -inf
        %v2091 = vsel %vm1676, %v1667, -inf
        %v2092 = vmax.f32 %v2090, %v2091
        %v2093 = vsel %vm1676, %v1669, -inf
        %v2094 = vmax.f32 %v2092, %v2093
        %v2095 = vsel %vm1676, %v1671, -inf
        %v2096 = vmax.f32 %v2094, %v2095
        %v2097 = vsel %vm1676, %v1673, -inf
        %v2098 = vmax.f32 %v2096, %v2097
        %v2099 = vsel %vm1676, %v1675, -inf
        %v2100 = vmax.f32 %v2098, %v2099
        %v2101 = vsel %vm1676, %v1935, -inf
        %v2102 = vsel %vm1676, %v1946, -inf
        %v2103 = vmax.f32 %v2101, %v2102
        %v2104 = vrot.slane %v2103, 4
        %v2105 = vmax.f32 %v2103, %v2104
        %v2106 = vrot.slane %v2105, 2
        %v2107 = vmax.f32 %v2105, %v2106
        %v2108 = vrot.slane %v2107, 1
        %v2109 = vmax.f32 %v2107, %v2108
        %v2110 = vsel %vm1676, %v1957, -inf
        %v2111 = vsel %vm1676, %v1968, -inf
        %v2112 = vmax.f32 %v2110, %v2111
        %v2113 = vrot.slane %v2112, 4
        %v2114 = vmax.f32 %v2112, %v2113
        %v2115 = vrot.slane %v2114, 2
        %v2116 = vmax.f32 %v2114, %v2115
        %v2117 = vrot.slane %v2116, 1
        %v2118 = vmax.f32 %v2116, %v2117
        %v2119 = vsel %vm1676, %v1979, -inf
        %v2120 = vsel %vm1676, %v1990, -inf
        %v2121 = vmax.f32 %v2119, %v2120
        %v2122 = vrot.slane %v2121, 4
        %v2123 = vmax.f32 %v2121, %v2122
        %v2124 = vrot.slane %v2123, 2
        %v2125 = vmax.f32 %v2123, %v2124
        %v2126 = vrot.slane %v2125, 1
        %v2127 = vmax.f32 %v2125, %v2126
        %v2128 = vsel %vm1676, %v2001, -inf
        %v2129 = vsel %vm1676, %v2012, -inf
        %v2130 = vmax.f32 %v2128, %v2129
        %v2131 = vrot.slane %v2130, 4
        %v2132 = vmax.f32 %v2130, %v2131
        %v2133 = vrot.slane %v2132, 2
        %v2134 = vmax.f32 %v2132, %v2133
        %v2135 = vrot.slane %v2134, 1
        %v2136 = vmax.f32 %v2134, %v2135
        %v2137 = vsel %vm1676, %v2023, -inf
        %v2138 = vsel %vm1676, %v2034, -inf
        %v2139 = vmax.f32 %v2137, %v2138
        %v2140 = vrot.slane %v2139, 4
        %v2141 = vmax.f32 %v2139, %v2140
        %v2142 = vrot.slane %v2141, 2
        %v2143 = vmax.f32 %v2141, %v2142
        %v2144 = vrot.slane %v2143, 1
        %v2145 = vmax.f32 %v2143, %v2144
        %v2146 = vsel %vm1676, %v2045, -inf
        %v2147 = vsel %vm1676, %v2056, -inf
        %v2148 = vmax.f32 %v2146, %v2147
        %v2149 = vrot.slane %v2148, 4
        %v2150 = vmax.f32 %v2148, %v2149
        %v2151 = vrot.slane %v2150, 2
        %v2152 = vmax.f32 %v2150, %v2151
        %v2153 = vrot.slane %v2152, 1
        %v2154 = vmax.f32 %v2152, %v2153
        %v2155 = vsel %vm1676, %v2067, -inf
        %v2156 = vsel %vm1676, %v2078, -inf
        %v2157 = vmax.f32 %v2155, %v2156
        %v2158 = vrot.slane %v2157, 4
        %v2159 = vmax.f32 %v2157, %v2158
        %v2160 = vrot.slane %v2159, 2
        %v2161 = vmax.f32 %v2159, %v2160
        %v2162 = vrot.slane %v2161, 1
        %v2163 = vmax.f32 %v2161, %v2162
        %v2164 = vsel %vm1676, %v2089, -inf
        %v2165 = vsel %vm1676, %v2100, -inf
        %v2166 = vmax.f32 %v2164, %v2165
        %v2167 = vrot.slane %v2166, 4
        %v2168 = vmax.f32 %v2166, %v2167
        %v2169 = vrot.slane %v2168, 2
        %v2170 = vmax.f32 %v2168, %v2169
        %v2171 = vrot.slane %v2170, 1
        %v2172 = vmax.f32 %v2170, %v2171
        %v2173 = vsel %vm1676, %v1683, -inf
        %v2174 = vsel %vm1676, %v1694, -inf
        %v2175 = vmax.f32 %v2173, %v2174
        %v2176 = vrot.slane %v2175, 4
        %v2177 = vmax.f32 %v2175, %v2176
        %v2178 = vrot.slane %v2177, 2
        %v2179 = vmax.f32 %v2177, %v2178
        %v2180 = vrot.slane %v2179, 1
        %v2181 = vmax.f32 %v2179, %v2180
        %v2182 = vsel %vm1676, %v1705, -inf
        %v2183 = vsel %vm1676, %v1716, -inf
        %v2184 = vmax.f32 %v2182, %v2183
        %v2185 = vrot.slane %v2184, 4
        %v2186 = vmax.f32 %v2184, %v2185
        %v2187 = vrot.slane %v2186, 2
        %v2188 = vmax.f32 %v2186, %v2187
        %v2189 = vrot.slane %v2188, 1
        %v2190 = vmax.f32 %v2188, %v2189
        %v2191 = vsel %vm1676, %v1727, -inf
        %v2192 = vsel %vm1676, %v1738, -inf
        %v2193 = vmax.f32 %v2191, %v2192
        %v2194 = vrot.slane %v2193, 4
        %v2195 = vmax.f32 %v2193, %v2194
        %v2196 = vrot.slane %v2195, 2
        %v2197 = vmax.f32 %v2195, %v2196
        %v2198 = vrot.slane %v2197, 1
        %v2199 = vmax.f32 %v2197, %v2198
        %v2200 = vsel %vm1676, %v1749, -inf
        %v2201 = vsel %vm1676, %v1760, -inf
        %v2202 = vmax.f32 %v2200, %v2201
        %v2203 = vrot.slane %v2202, 4
        %v2204 = vmax.f32 %v2202, %v2203
        %v2205 = vrot.slane %v2204, 2
        %v2206 = vmax.f32 %v2204, %v2205
        %v2207 = vrot.slane %v2206, 1
        %v2208 = vmax.f32 %v2206, %v2207
        %v2209 = vsel %vm1676, %v1771, -inf
        %v2210 = vsel %vm1676, %v1782, -inf
        %v2211 = vmax.f32 %v2209, %v2210
        %v2212 = vrot.slane %v2211, 4
        %v2213 = vmax.f32 %v2211, %v2212
        %v2214 = vrot.slane %v2213, 2
        %v2215 = vmax.f32 %v2213, %v2214
        %v2216 = vrot.slane %v2215, 1
        %v2217 = vmax.f32 %v2215, %v2216
        %v2218 = vsel %vm1676, %v1793, -inf
        %v2219 = vsel %vm1676, %v1804, -inf
        %v2220 = vmax.f32 %v2218, %v2219
        %v2221 = vrot.slane %v2220, 4
        %v2222 = vmax.f32 %v2220, %v2221
        %v2223 = vrot.slane %v2222, 2
        %v2224 = vmax.f32 %v2222, %v2223
        %v2225 = vrot.slane %v2224, 1
        %v2226 = vmax.f32 %v2224, %v2225
        %v2227 = vsel %vm1676, %v1815, -inf
        %v2228 = vsel %vm1676, %v1826, -inf
        %v2229 = vmax.f32 %v2227, %v2228
        %v2230 = vrot.slane %v2229, 4
        %v2231 = vmax.f32 %v2229, %v2230
        %v2232 = vrot.slane %v2231, 2
        %v2233 = vmax.f32 %v2231, %v2232
        %v2234 = vrot.slane %v2233, 1
        %v2235 = vmax.f32 %v2233, %v2234
        %v2236 = vsel %vm1676, %v1837, -inf
        %v2237 = vsel %vm1676, %v1848, -inf
        %v2238 = vmax.f32 %v2236, %v2237
        %v2239 = vrot.slane %v2238, 4
        %v2240 = vmax.f32 %v2238, %v2239
        %v2241 = vrot.slane %v2240, 2
        %v2242 = vmax.f32 %v2240, %v2241
        %v2243 = vrot.slane %v2242, 1
        %v2244 = vmax.f32 %v2242, %v2243
        %v2245 = vmax.f32 %v1684, %v1686
        %v2246 = vmax.f32 %v2245, %v1925
        %v2247 = vmax.f32 %v2246, %v1926
        %v2248 = vmax.f32 %v1695, %v1697
        %v2249 = vmax.f32 %v2248, %v1936
        %v2250 = vmax.f32 %v2249, %v1937
        %v2251 = vmax.f32 %v1706, %v1708
        %v2252 = vmax.f32 %v2251, %v1947
        %v2253 = vmax.f32 %v2252, %v1948
        %v2254 = vmax.f32 %v1717, %v1719
        %v2255 = vmax.f32 %v2254, %v1958
        %v2256 = vmax.f32 %v2255, %v1959
        %v2257 = vmax.f32 %v1728, %v1730
        %v2258 = vmax.f32 %v2257, %v1969
        %v2259 = vmax.f32 %v2258, %v1970
        %v2260 = vmax.f32 %v1739, %v1741
        %v2261 = vmax.f32 %v2260, %v1980
        %v2262 = vmax.f32 %v2261, %v1981
        %v2263 = vmax.f32 %v1750, %v1752
        %v2264 = vmax.f32 %v2263, %v1991
        %v2265 = vmax.f32 %v2264, %v1992
        %v2266 = vmax.f32 %v1761, %v1763
        %v2267 = vmax.f32 %v2266, %v2002
        %v2268 = vmax.f32 %v2267, %v2003
        %v2269 = vmax.f32 %v1772, %v1774
        %v2270 = vmax.f32 %v2269, %v2013
        %v2271 = vmax.f32 %v2270, %v2014
        %v2272 = vmax.f32 %v1783, %v1785
        %v2273 = vmax.f32 %v2272, %v2024
        %v2274 = vmax.f32 %v2273, %v2025
        %v2275 = vmax.f32 %v1794, %v1796
        %v2276 = vmax.f32 %v2275, %v2035
        %v2277 = vmax.f32 %v2276, %v2036
        %v2278 = vmax.f32 %v1805, %v1807
        %v2279 = vmax.f32 %v2278, %v2046
        %v2280 = vmax.f32 %v2279, %v2047
        %v2281 = vmax.f32 %v1816, %v1818
        %v2282 = vmax.f32 %v2281, %v2057
        %v2283 = vmax.f32 %v2282, %v2058
        %v2284 = vmax.f32 %v1827, %v1829
        %v2285 = vmax.f32 %v2284, %v2068
        %v2286 = vmax.f32 %v2285, %v2069
        %v2287 = vmax.f32 %v1838, %v1840
        %v2288 = vmax.f32 %v2287, %v2079
        %v2289 = vmax.f32 %v2288, %v2080
        %v2290 = vmax.f32 %v1849, %v1851
        %v2291 = vmax.f32 %v2290, %v2090
        %v2292 = vmax.f32 %v2291, %v2091
        %v2293 = vsel %vm1676, %v2247, -inf
        %v2294 = vsel %vm1676, %v2250, -inf
        %v2295 = vmax.f32 %v2293, %v2294
        %v2296 = vrot.slane %v2295, 4
        %v2297 = vmax.f32 %v2295, %v2296
        %v2298 = vrot.slane %v2297, 2
        %v2299 = vmax.f32 %v2297, %v2298
        %v2300 = vrot.slane %v2299, 1
        %v2301 = vmax.f32 %v2299, %v2300
        %v2302 = vsel %vm1676, %v2253, -inf
        %v2303 = vsel %vm1676, %v2256, -inf
        %v2304 = vmax.f32 %v2302, %v2303
        %v2305 = vrot.slane %v2304, 4
        %v2306 = vmax.f32 %v2304, %v2305
        %v2307 = vrot.slane %v2306, 2
        %v2308 = vmax.f32 %v2306, %v2307
        %v2309 = vrot.slane %v2308, 1
        %v2310 = vmax.f32 %v2308, %v2309
        %v2311 = vsel %vm1676, %v2259, -inf
        %v2312 = vsel %vm1676, %v2262, -inf
        %v2313 = vmax.f32 %v2311, %v2312
        %v2314 = vrot.slane %v2313, 4
        %v2315 = vmax.f32 %v2313, %v2314
        %v2316 = vrot.slane %v2315, 2
        %v2317 = vmax.f32 %v2315, %v2316
        %v2318 = vrot.slane %v2317, 1
        %v2319 = vmax.f32 %v2317, %v2318
        %v2320 = vsel %vm1676, %v2265, -inf
        %v2321 = vsel %vm1676, %v2268, -inf
        %v2322 = vmax.f32 %v2320, %v2321
        %v2323 = vrot.slane %v2322, 4
        %v2324 = vmax.f32 %v2322, %v2323
        %v2325 = vrot.slane %v2324, 2
        %v2326 = vmax.f32 %v2324, %v2325
        %v2327 = vrot.slane %v2326, 1
        %v2328 = vmax.f32 %v2326, %v2327
        %v2329 = vsel %vm1676, %v2271, -inf
        %v2330 = vsel %vm1676, %v2274, -inf
        %v2331 = vmax.f32 %v2329, %v2330
        %v2332 = vrot.slane %v2331, 4
        %v2333 = vmax.f32 %v2331, %v2332
        %v2334 = vrot.slane %v2333, 2
        %v2335 = vmax.f32 %v2333, %v2334
        %v2336 = vrot.slane %v2335, 1
        %v2337 = vmax.f32 %v2335, %v2336
        %v2338 = vsel %vm1676, %v2277, -inf
        %v2339 = vsel %vm1676, %v2280, -inf
        %v2340 = vmax.f32 %v2338, %v2339
        %v2341 = vrot.slane %v2340, 4
        %v2342 = vmax.f32 %v2340, %v2341
        %v2343 = vrot.slane %v2342, 2
        %v2344 = vmax.f32 %v2342, %v2343
        %v2345 = vrot.slane %v2344, 1
        %v2346 = vmax.f32 %v2344, %v2345
        %v2347 = vsel %vm1676, %v2283, -inf
        %v2348 = vsel %vm1676, %v2286, -inf
        %v2349 = vmax.f32 %v2347, %v2348
        %v2350 = vrot.slane %v2349, 4
        %v2351 = vmax.f32 %v2349, %v2350
        %v2352 = vrot.slane %v2351, 2
        %v2353 = vmax.f32 %v2351, %v2352
        %v2354 = vrot.slane %v2353, 1
        %v2355 = vmax.f32 %v2353, %v2354
        %v2356 = vsel %vm1676, %v2289, -inf
        %v2357 = vsel %vm1676, %v2292, -inf
        %v2358 = vmax.f32 %v2356, %v2357
        %v2359 = vrot.slane %v2358, 4
        %v2360 = vmax.f32 %v2358, %v2359
        %v2361 = vrot.slane %v2360, 2
        %v2362 = vmax.f32 %v2360, %v2361
        %v2363 = vrot.slane %v2362, 1
        %v2364 = vmax.f32 %v2362, %v2363
        %v2365 = vmax.f32 %v1928, %v1930
        %v2366 = vmax.f32 %v2365, %v1932
        %v2367 = vmax.f32 %v2366, %v1934
        %v2368 = vmax.f32 %v1939, %v1941
        %v2369 = vmax.f32 %v2368, %v1943
        %v2370 = vmax.f32 %v2369, %v1945
        %v2371 = vmax.f32 %v1950, %v1952
        %v2372 = vmax.f32 %v2371, %v1954
        %v2373 = vmax.f32 %v2372, %v1956
        %v2374 = vmax.f32 %v1961, %v1963
        %v2375 = vmax.f32 %v2374, %v1965
        %v2376 = vmax.f32 %v2375, %v1967
        %v2377 = vmax.f32 %v1972, %v1974
        %v2378 = vmax.f32 %v2377, %v1976
        %v2379 = vmax.f32 %v2378, %v1978
        %v2380 = vmax.f32 %v1983, %v1985
        %v2381 = vmax.f32 %v2380, %v1987
        %v2382 = vmax.f32 %v2381, %v1989
        %v2383 = vmax.f32 %v1994, %v1996
        %v2384 = vmax.f32 %v2383, %v1998
        %v2385 = vmax.f32 %v2384, %v2000
        %v2386 = vmax.f32 %v2005, %v2007
        %v2387 = vmax.f32 %v2386, %v2009
        %v2388 = vmax.f32 %v2387, %v2011
        %v2389 = vmax.f32 %v2016, %v2018
        %v2390 = vmax.f32 %v2389, %v2020
        %v2391 = vmax.f32 %v2390, %v2022
        %v2392 = vmax.f32 %v2027, %v2029
        %v2393 = vmax.f32 %v2392, %v2031
        %v2394 = vmax.f32 %v2393, %v2033
        %v2395 = vmax.f32 %v2038, %v2040
        %v2396 = vmax.f32 %v2395, %v2042
        %v2397 = vmax.f32 %v2396, %v2044
        %v2398 = vmax.f32 %v2049, %v2051
        %v2399 = vmax.f32 %v2398, %v2053
        %v2400 = vmax.f32 %v2399, %v2055
        %v2401 = vmax.f32 %v2060, %v2062
        %v2402 = vmax.f32 %v2401, %v2064
        %v2403 = vmax.f32 %v2402, %v2066
        %v2404 = vmax.f32 %v2071, %v2073
        %v2405 = vmax.f32 %v2404, %v2075
        %v2406 = vmax.f32 %v2405, %v2077
        %v2407 = vmax.f32 %v2082, %v2084
        %v2408 = vmax.f32 %v2407, %v2086
        %v2409 = vmax.f32 %v2408, %v2088
        %v2410 = vmax.f32 %v2093, %v2095
        %v2411 = vmax.f32 %v2410, %v2097
        %v2412 = vmax.f32 %v2411, %v2099
        %v2413 = vsel %vm1676, %v2367, -inf
        %v2414 = vsel %vm1676, %v2370, -inf
        %v2415 = vmax.f32 %v2413, %v2414
        %v2416 = vrot.slane %v2415, 4
        %v2417 = vmax.f32 %v2415, %v2416
        %v2418 = vrot.slane %v2417, 2
        %v2419 = vmax.f32 %v2417, %v2418
        %v2420 = vrot.slane %v2419, 1
        %v2421 = vmax.f32 %v2419, %v2420
        %v2422 = vsel %vm1676, %v2373, -inf
        %v2423 = vsel %vm1676, %v2376, -inf
        %v2424 = vmax.f32 %v2422, %v2423
        %v2425 = vrot.slane %v2424, 4
        %v2426 = vmax.f32 %v2424, %v2425
        %v2427 = vrot.slane %v2426, 2
        %v2428 = vmax.f32 %v2426, %v2427
        %v2429 = vrot.slane %v2428, 1
        %v2430 = vmax.f32 %v2428, %v2429
        %v2431 = vsel %vm1676, %v2379, -inf
        %v2432 = vsel %vm1676, %v2382, -inf
        %v2433 = vmax.f32 %v2431, %v2432
        %v2434 = vrot.slane %v2433, 4
        %v2435 = vmax.f32 %v2433, %v2434
        %v2436 = vrot.slane %v2435, 2
        %v2437 = vmax.f32 %v2435, %v2436
        %v2438 = vrot.slane %v2437, 1
        %v2439 = vmax.f32 %v2437, %v2438
        %v2440 = vsel %vm1676, %v2385, -inf
        %v2441 = vsel %vm1676, %v2388, -inf
        %v2442 = vmax.f32 %v2440, %v2441
        %v2443 = vrot.slane %v2442, 4
        %v2444 = vmax.f32 %v2442, %v2443
        %v2445 = vrot.slane %v2444, 2
        %v2446 = vmax.f32 %v2444, %v2445
        %v2447 = vrot.slane %v2446, 1
        %v2448 = vmax.f32 %v2446, %v2447
        %v2449 = vsel %vm1676, %v2391, -inf
        %v2450 = vsel %vm1676, %v2394, -inf
        %v2451 = vmax.f32 %v2449, %v2450
        %v2452 = vrot.slane %v2451, 4
        %v2453 = vmax.f32 %v2451, %v2452
        %v2454 = vrot.slane %v2453, 2
        %v2455 = vmax.f32 %v2453, %v2454
        %v2456 = vrot.slane %v2455, 1
        %v2457 = vmax.f32 %v2455, %v2456
        %v2458 = vsel %vm1676, %v2397, -inf
        %v2459 = vsel %vm1676, %v2400, -inf
        %v2460 = vmax.f32 %v2458, %v2459
        %v2461 = vrot.slane %v2460, 4
        %v2462 = vmax.f32 %v2460, %v2461
        %v2463 = vrot.slane %v2462, 2
        %v2464 = vmax.f32 %v2462, %v2463
        %v2465 = vrot.slane %v2464, 1
        %v2466 = vmax.f32 %v2464, %v2465
        %v2467 = vsel %vm1676, %v2403, -inf
        %v2468 = vsel %vm1676, %v2406, -inf
        %v2469 = vmax.f32 %v2467, %v2468
        %v2470 = vrot.slane %v2469, 4
        %v2471 = vmax.f32 %v2469, %v2470
        %v2472 = vrot.slane %v2471, 2
        %v2473 = vmax.f32 %v2471, %v2472
        %v2474 = vrot.slane %v2473, 1
        %v2475 = vmax.f32 %v2473, %v2474
        %v2476 = vsel %vm1676, %v2409, -inf
        %v2477 = vsel %vm1676, %v2412, -inf
        %v2478 = vmax.f32 %v2476, %v2477
        %v2479 = vrot.slane %v2478, 4
        %v2480 = vmax.f32 %v2478, %v2479
        %v2481 = vrot.slane %v2480, 2
        %v2482 = vmax.f32 %v2480, %v2481
        %v2483 = vrot.slane %v2482, 1
        %v2484 = vmax.f32 %v2482, %v2483
        %v2485 = vmax.f32 %v1861, %v2109
        %v2486 = vmax.f32 %v1870, %v2118
        %v2487 = vmax.f32 %v1879, %v2127
        %v2488 = vmax.f32 %v1888, %v2136
        %v2489 = vmax.f32 %v1897, %v2145
        %v2490 = vmax.f32 %v1906, %v2154
        %v2491 = vmax.f32 %v1915, %v2163
        %v2492 = vmax.f32 %v1924, %v2172
        %v2501 = vsel %vm1298, %v2486, %v2485
        %v2502 = vsel %vm1300, %v2487, %v2501
        %v2503 = vsel %vm1302, %v2488, %v2502
        %v2504 = vsel %vm1304, %v2489, %v2503
        %v2505 = vsel %vm1306, %v2490, %v2504
        %v2506 = vsel %vm1308, %v2491, %v2505
        %v2507 = vsel %vm1310, %v2492, %v2506
        %2509 = vst.msk [vmem:[#allocation2] sm:$0xff] %vm1676, %v2507
        %v2518 = vsel %vm1298, %v1870, %v1861
        %v2519 = vsel %vm1300, %v1879, %v2518
        %v2520 = vsel %vm1302, %v1888, %v2519
        %v2521 = vsel %vm1304, %v1897, %v2520
        %v2522 = vsel %vm1306, %v1906, %v2521
        %v2523 = vsel %vm1308, %v1915, %v2522
        %v2524 = vsel %vm1310, %v1924, %v2523
        %2525 = vrot.lane.b32.xlu0 %v2524, 8
        %v2526 = vpop.permute.xlu0 %2525
        %vm2528 = vcmask 130112
        %2529 = vst.msk [vmem:[#allocation2] sm:$0xff] %vm2528, %v2526
        %v2538 = vsel %vm1298, %v2118, %v2109
        %v2539 = vsel %vm1300, %v2127, %v2538
        %v2540 = vsel %vm1302, %v2136, %v2539
        %v2541 = vsel %vm1304, %v2145, %v2540
        %v2542 = vsel %vm1306, %v2154, %v2541
        %v2543 = vsel %vm1308, %v2163, %v2542
        %v2544 = vsel %vm1310, %v2172, %v2543
        %2545 = vrot.lane.b32.xlu0 %v2544, 16
        %v2546 = vpop.permute.xlu0 %2545
        %vm2548 = vcmask 195712
        %2549 = vst.msk [vmem:[#allocation2] sm:$0xff] %vm2548, %v2546
        %v2558 = vsel %vm1298, %v2190, %v2181
        %v2559 = vsel %vm1300, %v2199, %v2558
        %v2560 = vsel %vm1302, %v2208, %v2559
        %v2561 = vsel %vm1304, %v2217, %v2560
        %v2562 = vsel %vm1306, %v2226, %v2561
        %v2563 = vsel %vm1308, %v2235, %v2562
        %v2564 = vsel %vm1310, %v2244, %v2563
        %2565 = vrot.lane.b32.xlu0 %v2564, 24
        %v2566 = vpop.permute.xlu0 %2565
        %vm2568 = vcmask 261312
        %2569 = vst.msk [vmem:[#allocation2] sm:$0xff] %vm2568, %v2566
        %v2578 = vsel %vm1298, %v2310, %v2301
        %v2579 = vsel %vm1300, %v2319, %v2578
        %v2580 = vsel %vm1302, %v2328, %v2579
        %v2581 = vsel %vm1304, %v2337, %v2580
        %v2582 = vsel %vm1306, %v2346, %v2581
        %v2583 = vsel %vm1308, %v2355, %v2582
        %v2584 = vsel %vm1310, %v2364, %v2583
        %2585 = vrot.lane.b32.xlu0 %v2584, 32
        %v2586 = vpop.permute.xlu0 %2585
        %vm2588 = vcmask 326912
        %2589 = vst.msk [vmem:[#allocation2] sm:$0xff] %vm2588, %v2586
        %v2598 = vsel %vm1298, %v2430, %v2421
        %v2599 = vsel %vm1300, %v2439, %v2598
        %v2600 = vsel %vm1302, %v2448, %v2599
        %v2601 = vsel %vm1304, %v2457, %v2600
        %v2602 = vsel %vm1306, %v2466, %v2601
        %v2603 = vsel %vm1308, %v2475, %v2602
        %v2604 = vsel %vm1310, %v2484, %v2603
        %2605 = vrot.lane.b32.xlu0 %v2604, 40
        %v2606 = vpop.permute.xlu0 %2605
        %vm2608 = vcmask 392512
        %2609 = vst.msk [vmem:[#allocation2] sm:$0xff] %vm2608, %v2606
        %v2610 = vld [vmem:[#allocation2] sm:$0xff]
        %v2611 = vpack.c.bf16 %v2610, %v2610
        %v2612 = vld [vmem:[%s4] sm:$0xf]
        %v2613 = vld [vmem:[%s4 + $0x4] sm:$0xf]
        %v2614 = vld [vmem:[%s4 + $0x8] sm:$0xf]
        %v2615 = vld [vmem:[%s4 + $0xc] sm:$0xf]
        %v2616 = vld [vmem:[%s4 + $0x10] sm:$0xf]
        %v2617 = vld [vmem:[%s4 + $0x14] sm:$0xf]
        %v2618 = vld [vmem:[%s5] sm:$0x1]
        %v2620 = vlaneseq
        %v2621 = vshrl.u32 %v2620, 7
        %v2622 = vsub.s32 0, %v2621
        %v2623 = vrot.slane %v2618, %v2622
        %v2631 = vunpack.c.l.b16 %v2612
        %v2632 = vunpack.c.l.b16 %v2613
        %v2633 = vunpack.c.l.b16 %v2614
        %v2634 = vunpack.c.l.b16 %v2615
        %v2635 = vunpack.c.l.b16 %v2616
        %v2636 = vunpack.c.l.b16 %v2617
        %v2637 = vpack.c.b16 %v2632, %v2631
        %v2638 = vpack.c.b16 %v2634, %v2633
        %v2639 = vpack.c.b16 %v2636, %v2635
        %vm2643 = vcmask 392192
        %v2645 = vsel %vm2643, %v2611, 0
        %2647 = vmatprep.subr.bf16.mxu0 0
        %2648 = vmatpush1.bf16.msra.mxu0 %v2637
        %2649 = vmatprep.subr.bf16.mxu0 0
        %2650 = vmatpush1.bf16.msra.mxu0 %v2638
        %2651 = vmatprep.subr.bf16.mxu0 0
        %2652 = vmatpush1.bf16.msra.mxu0 %v2639
        %2653 = vmatprep.subr.bf16.mxu0 0
        %2654 = vmatpush1.bf16.msra.mxu0 0
        %2655 = vmatprep.subr.bf16.mxu0 0
        %2656 = vmatpush1.bf16.msra.mxu0 0
        %2657 = vmatprep.subr.bf16.mxu0 0
        %2658 = vmatpush1.bf16.msra.mxu0 0
        %2659 = vmatprep.subr.bf16.mxu0 0
        %2660 = vmatpush1.bf16.msra.mxu0 0
        %2661 = vmatprep.subr.bf16.mxu0 0
        %2662 = vmatpush1.bf16.msra.mxu0 0
        %2663 = vmatprep.subr.bf16.mxu0 0
        %2664 = vmatpush1.bf16.msra.mxu0 0
        %2665 = vmatprep.subr.bf16.mxu0 0
        %2666 = vmatpush1.bf16.msra.mxu0 0
        %2667 = vmatprep.subr.bf16.mxu0 0
        %2668 = vmatpush1.bf16.msra.mxu0 0
        %2669 = vmatprep.subr.bf16.mxu0 0
        %2670 = vmatpush1.bf16.msra.mxu0 0
        %2671 = vmatprep.subr.bf16.mxu0 0
        %2672 = vmatpush1.bf16.msra.mxu0 0
        %2673 = vmatprep.subr.bf16.mxu0 0
        %2674 = vmatpush1.bf16.msra.mxu0 0
        %2675 = vmatprep.subr.bf16.mxu0 0
        %2676 = vmatpush1.bf16.msra.mxu0 0
        %2677 = vmatprep.subr.bf16.mxu0 0
        %2678 = vmatpush1.bf16.msra.mxu0 0
        %2679 = vmatprep.mubr.bf16.mxu0 0
        %2680 = vmatmul.mubr.bf16.gmra.mrb[0].mxu0 %v2645
        %v2681 = vpop.f32.mrb[0].mxu0
        %v2682 = vadd.f32 %v2623, %v2681
        %v2683 = vpop.f32.mrb[0].mxu0
        %v2684 = vpop.f32.mrb[0].mxu0
        %v2685 = vpop.f32.mrb[0].mxu0
        %2686 = vdwg.mxu0
        %2687 = vst [vmem:[%s265 + $0x8] sm:$0xff] %v2682
        %s2688 = sand.u32 %s164, 1
        %s2689 = scalar_lea.sflag [#allocation4], %s2688
        %s2690 = sand.u32 %s164, 1
        %s2691 = smul.addr %s2690, 16
        %s2692 = scalar_lea.vmem [#allocation3], %s2691
        // Predicated region
        $region45: #{tpu_custom_call.1} parent=43 // pred_check
          %p2693 = pneg %p174
        $region46: #{tpu_custom_call.1} parent=43 // pred_check_branch
          %2695 = sbr.rel (%p2693) target = $region48
        $region47: #{tpu_custom_call.1} parent=43 // pred_region
          %s2697 = ssub.s32 256, 256
          %2698 = vsyncadd %s2689, %s2697
          %s2699 = smul.addr %s20, 2
          %s2700 = smul.addr %s2699, 128
          %s2701 = scalar_lea.hbm %s6, %s2700
          %s2703 = sshll.u32 %s2692, 4
          %s2704 = int_to_ptr.vmem [resolvable:$true] %s2703
          %2706 = dma.vmem_to_hbm [thread:$0]  %s2704, 256, %s2701, %s2689
        $region48: #{tpu_custom_call.1} parent=43 // pred_fallthru
          _
      $region44: #{tpu_custom_call.1} parent=5 // pred_fallthru
        _
      %p2707 = scmp.le.s32.totalorder 2, %s15
      // Predicated region
      $region49: #{tpu_custom_call.1} parent=5 // pred_check
        %p2708 = pneg %p2707
      $region50: #{tpu_custom_call.1} parent=5 // pred_check_branch
        %2710 = sbr.rel (%p2708) target = $region52
      $region51: #{tpu_custom_call.1} parent=5 // pred_region
        %s2711 = ssub.s32 %s15, 2
        // Predicated region
        $region53: #{tpu_custom_call.1} parent=51 // pred_check
          %p2712 = pneg %p180
        $region54: #{tpu_custom_call.1} parent=51 // pred_check_branch
          %2714 = sbr.rel (%p2712) target = $region56
        $region55: #{tpu_custom_call.1} parent=51 // pred_region
          %s2715 = sand.u32 %s165, 1
          %s2716 = scalar_lea.sflag [#allocation4], %s2715
          %s2717 = sand.u32 %s165, 1
          %s2718 = smul.addr %s2717, 16
          %s2719 = scalar_lea.vmem [#allocation3], %s2718
          %2720 = dma.done %s2716, 256
        $region56: #{tpu_custom_call.1} parent=51 // pred_fallthru
          _
      $region52: #{tpu_custom_call.1} parent=5 // pred_fallthru
        _
    $region6: #{tpu_custom_call.1} parent=1 // loop_footer
      %s19 = sadd.s32 1, %s15
    $region7: #{tpu_custom_call.1} parent=1 // loop_footer_branch
      %14 = sbr.rel target = $region3
    $region8: #{tpu_custom_call.1} parent=1 // loop_exit
      _
    %2721 = vsyncpa [#allocation4], 1
    %s2722 = scalar_lea.sflag [#allocation4], 1
    %2723 = vsyncpa %s2722, 1

</llo_original>
